<compile_context>
chip_gen: v7x
topology: tpu7x:2x2x1
jax: 0.10.0
libtpu: 0.0.40
codegen_flags: <defaults>
</compile_context>

<pallas_src>
import jax
import jax.numpy as jnp
import numpy as np
from jax.experimental import pallas as pl
from jax.experimental.pallas import tpu as pltpu


def _round_up(x, m):
    return (x + m - 1) // m * m


def gru_encoder_kernel(x_ref, wih_ref, whh_ref, bih_ref, bhh_ref,
                       out_ref, hN_ref, gi_ref):
    # Shapes (all padded, static):
    #   x_ref  : (S*Bp, E)     time-major flattened embedded input
    #   wih_ref: (E, 3*Hp)     gate blocks [r | z | n], each Hp lanes wide
    #   whh_ref: (Hp, 3*Hp)
    #   bih_ref, bhh_ref: (1, 3*Hp)
    #   out_ref: (S*Bp, Hp)    per-step hidden states (lane-dense slab)
    #   hN_ref : (Bp, Hp)      final hidden state
    #   gi_ref : (S*Bp, 3*Hp)  VMEM scratch for the hoisted input projection
    sb, _ = x_ref.shape
    bp, hp = hN_ref.shape
    s = sb // bp

    # Input projection for ALL timesteps at once (independent of h): one large
    # MXU matmul instead of one tiny matmul per recurrence step.
    gi_ref[...] = (
        jnp.dot(x_ref[...], wih_ref[...], preferred_element_type=jnp.float32)
        + bih_ref[...])

    w_hh = whh_ref[...]
    b_hh = bhh_ref[...]

    def step(t, h):
        row = pl.multiple_of(t * bp, 8)
        gi = gi_ref[pl.ds(row, bp), :]                       # (Bp, 3*Hp)
        # Only h-dependent matmul on the serial recurrence path.
        gh = jnp.dot(h, w_hh, preferred_element_type=jnp.float32) + b_hh
        # Lane-aligned gate blocks (each exactly Hp = 128 lanes wide).
        r = jax.nn.sigmoid(gi[:, 0:hp] + gh[:, 0:hp])
        z = jax.nn.sigmoid(gi[:, hp:2 * hp] + gh[:, hp:2 * hp])
        n = jnp.tanh(gi[:, 2 * hp:] + r * gh[:, 2 * hp:])    # gh_n includes b_hn
        h_new = (1.0 - z) * n + z * h                        # PyTorch GRU update
        out_ref[pl.ds(row, bp), :] = h_new                   # VMEM-resident output
        return h_new

    h0 = jnp.zeros((bp, hp), jnp.float32)
    # S is small and static: fully unroll so the scheduler can overlap the
    # gate math of step t with the matmul of step t+1.
    hN_ref[...] = jax.lax.fori_loop(0, s, step, h0, unroll=True)


def _pad_gate_cols(w, h, hp, rows_out):
    """(rows, 3*h) -> (rows_out, 3*hp): pad each gate block [r|z|n] to hp lanes."""
    rows = w.shape[0]
    out = jnp.zeros((rows_out, 3 * hp), w.dtype)
    for g in range(3):
        out = out.at[:rows, g * hp:g * hp + h].set(w[:, g * h:(g + 1) * h])
    return out


@jax.jit
def gru_encoder(x_emb, w_ih, w_hh, b_ih, b_hh):
    """x_emb: (S, B, E); weights pre-transposed so the kernel does x @ W.

    Returns (outputs (S, B, H), final_hidden (B, H))."""
    S, B, E = x_emb.shape
    H = w_hh.shape[0]
    Bp = _round_up(max(B, 8), 8)      # f32 sublane granularity
    Hp = _round_up(max(H, 128), 128)  # lane width: each gate = full vreg width

    # Pad weights/biases per gate.  Padded rows/cols are zero; padded hidden
    # columns stay exactly 0 through the recurrence (r=z=0.5, n=0 ->
    # h_new = 0.5*h = 0), so they never contaminate real columns.
    w_ih_p = _pad_gate_cols(w_ih, H, Hp, E)
    w_hh_p = _pad_gate_cols(w_hh, H, Hp, Hp)
    b_ih_p = _pad_gate_cols(b_ih, H, Hp, 1)
    b_hh_p = _pad_gate_cols(b_hh, H, Hp, 1)

    # Pad batch to Bp sublanes and flatten time into the sublane dim so the
    # kernel sees 2-D lane/sublane-aligned slabs (no in-kernel reshapes).
    x_p = jnp.zeros((S, Bp, E), x_emb.dtype).at[:, :B, :].set(x_emb)
    x_p = x_p.reshape(S * Bp, E)

    vmem = pl.BlockSpec(memory_space=pltpu.MemorySpace.VMEM)
    outs_flat, h_final_p = pl.pallas_call(
        gru_encoder_kernel,
        out_shape=(jax.ShapeDtypeStruct((S * Bp, Hp), jnp.float32),
                   jax.ShapeDtypeStruct((Bp, Hp), jnp.float32)),
        in_specs=[vmem] * 5,                 # whole arrays resident in VMEM
        out_specs=(vmem, vmem),              # single writeback at kernel end
        scratch_shapes=[pltpu.VMEM((S * Bp, 3 * Hp), jnp.float32)],
    )(x_p, w_ih_p, w_hh_p, b_ih_p, b_hh_p)

    outs = outs_flat.reshape(S, Bp, Hp)[:, :B, :H]
    h_final = h_final_p[:B, :H]
    return outs, h_final


def gru_reference(x_emb, w_ih, w_hh, b_ih, b_hh):
    """Pure-JAX reference (matches torch.nn.GRU math)."""
    S, B, E = x_emb.shape
    H = w_hh.shape[0]

    def step(h, x):
        gi = x @ w_ih + b_ih
        gh = h @ w_hh + b_hh
        i_r, i_z, i_n = gi[:, :H], gi[:, H:2 * H], gi[:, 2 * H:]
        h_r, h_z, h_n = gh[:, :H], gh[:, H:2 * H], gh[:, 2 * H:]
        r = jax.nn.sigmoid(i_r + h_r)
        z = jax.nn.sigmoid(i_z + h_z)
        n = jnp.tanh(i_n + r * h_n)
        h_new = (1.0 - z) * n + z * h
        return h_new, h_new

    h0 = jnp.zeros((B, H), jnp.float32)
    hN, outs = jax.lax.scan(step, h0, x_emb)
    return outs, hN


if __name__ == "__main__":
    VOCAB, EMBED, HIDDEN = 40, 32, 32
    SEQ, BATCH = 8, 4

    key = jax.random.PRNGKey(0)
    k_tok, k_emb, k_wih, k_whh, k_bih, k_bhh = jax.random.split(key, 6)

    # Deterministic synthetic parameters (shapes implied by Embedding + GRU).
    tokens = jax.random.randint(k_tok, (BATCH, SEQ), 0, VOCAB)          # (batch, seq)
    emb_table = jax.random.normal(k_emb, (VOCAB, EMBED), jnp.float32) * 0.1
    w_ih = jax.random.normal(k_wih, (EMBED, 3 * HIDDEN), jnp.float32) * 0.1
    w_hh = jax.random.normal(k_whh, (HIDDEN, 3 * HIDDEN), jnp.float32) * 0.1
    b_ih = jax.random.normal(k_bih, (1, 3 * HIDDEN), jnp.float32) * 0.1
    b_hh = jax.random.normal(k_bhh, (1, 3 * HIDDEN), jnp.float32) * 0.1

    # Glue: embedding gather + permute to time-major (seq, batch, embed),
    # mirroring `self.embedding(X).permute(1, 0, 2)` in the PyTorch encoder.
    x_emb = jnp.take(emb_table, tokens, axis=0)          # (batch, seq, embed)
    x_emb = jnp.transpose(x_emb, (1, 0, 2))              # (seq, batch, embed)

    outs, h_final = gru_encoder(x_emb, w_ih, w_hh, b_ih, b_hh)
    jax.block_until_ready((outs, h_final))

    ref_outs, ref_h = gru_reference(x_emb, w_ih, w_hh, b_ih, b_hh)
    np.testing.assert_allclose(np.asarray(outs), np.asarray(ref_outs),
                               rtol=1e-5, atol=1e-5)
    np.testing.assert_allclose(np.asarray(h_final), np.asarray(ref_h),
                               rtol=1e-5, atol=1e-5)

    print("KERNEL_OK")
</pallas_src>

<mosaic_0001>
module attributes {stable_mosaic.version = 11 : i64} {
  func.func @gru_encoder_kernel(%arg0: memref<64x32xf32, #tpu.memory_space<vmem>>, %arg1: memref<32x384xf32, #tpu.memory_space<vmem>>, %arg2: memref<128x384xf32, #tpu.memory_space<vmem>>, %arg3: memref<1x384xf32, #tpu.memory_space<vmem>>, %arg4: memref<1x384xf32, #tpu.memory_space<vmem>>, %arg5: memref<64x128xf32, #tpu.memory_space<vmem>>, %arg6: memref<8x128xf32, #tpu.memory_space<vmem>>, %arg7: memref<64x384xf32, #tpu.memory_space<vmem>>) attributes {dimension_semantics = [], scalar_prefetch = 0 : i64, scratch_operands = 1 : i64, tpu.core_type = #tpu.core_type<tc>} {
    %c0 = arith.constant 0 : index
    %c0_0 = arith.constant 0 : index
    %0 = vector.load %arg0[%c0, %c0_0] : memref<64x32xf32, #tpu.memory_space<vmem>>, vector<64x32xf32>
    %c0_1 = arith.constant 0 : index
    %c0_2 = arith.constant 0 : index
    %1 = vector.load %arg1[%c0_1, %c0_2] : memref<32x384xf32, #tpu.memory_space<vmem>>, vector<32x384xf32>
    %cst = arith.constant dense<0.000000e+00> : vector<64x384xf32>
    %2 = tpu.matmul %0, %1, %cst {dimension_numbers = #tpu.dot_dimension_numbers<[1], [0], [0], [1], [0, 0, 1, 1], [], []>} : vector<64x32xf32>, vector<32x384xf32>, vector<64x384xf32> -> vector<64x384xf32>
    %c0_3 = arith.constant 0 : index
    %c0_4 = arith.constant 0 : index
    %3 = vector.load %arg3[%c0_3, %c0_4] : memref<1x384xf32, #tpu.memory_space<vmem>>, vector<1x384xf32>
    %4 = vector.broadcast %3 : vector<1x384xf32> to vector<64x384xf32>
    %5 = arith.addf %2, %4 : vector<64x384xf32>
    %c0_5 = arith.constant 0 : index
    %c0_6 = arith.constant 0 : index
    %6 = vector.load %arg7[%c0_5, %c0_6] : memref<64x384xf32, #tpu.memory_space<vmem>>, vector<64x384xf32>
    tpu.vector_store %arg7[%c0_5, %c0_6], %5 {strides = array<i32>} : memref<64x384xf32, #tpu.memory_space<vmem>>, vector<64x384xf32>,
    %c0_7 = arith.constant 0 : index
    %c0_8 = arith.constant 0 : index
    %7 = vector.load %arg2[%c0_7, %c0_8] : memref<128x384xf32, #tpu.memory_space<vmem>>, vector<128x384xf32>
    %c0_9 = arith.constant 0 : index
    %c0_10 = arith.constant 0 : index
    %8 = vector.load %arg4[%c0_9, %c0_10] : memref<1x384xf32, #tpu.memory_space<vmem>>, vector<1x384xf32>
    %cst_11 = arith.constant 0.000000e+00 : f32
    %9 = vector.broadcast %cst_11 : f32 to vector<8x128xf32>
    %c0_i32 = arith.constant 0 : i32
    %c8_i32 = arith.constant 8 : i32
    %10 = arith.muli %c0_i32, %c8_i32 : i32
    %11 = tpu.assume_multiple %10, 8 : i32
    %12 = arith.index_cast %11 : i32 to index
    %c0_12 = arith.constant 0 : index
    %13 = vector.load %arg7[%12, %c0_12] : memref<64x384xf32, #tpu.memory_space<vmem>>, vector<8x384xf32>
    %cst_13 = arith.constant dense<0.000000e+00> : vector<8x384xf32>
    %14 = tpu.matmul %9, %7, %cst_13 {dimension_numbers = #tpu.dot_dimension_numbers<[1], [0], [0], [1], [0, 0, 1, 1], [], []>} : vector<8x128xf32>, vector<128x384xf32>, vector<8x384xf32> -> vector<8x384xf32>
    %15 = vector.broadcast %8 : vector<1x384xf32> to vector<8x384xf32>
    %16 = arith.addf %14, %15 : vector<8x384xf32>
    %17 = vector.extract_strided_slice %13 {offsets = [0, 0], sizes = [8, 128], strides = [1, 1]} : vector<8x384xf32> to vector<8x128xf32>
    %18 = vector.extract_strided_slice %16 {offsets = [0, 0], sizes = [8, 128], strides = [1, 1]} : vector<8x384xf32> to vector<8x128xf32>
    %19 = arith.addf %17, %18 : vector<8x128xf32>
    %20 = arith.negf %19 : vector<8x128xf32>
    %21 = math.exp %20 : vector<8x128xf32>
    %cst_14 = arith.constant 1.000000e+00 : f32
    %22 = vector.broadcast %cst_14 : f32 to vector<8x128xf32>
    %23 = arith.addf %22, %21 : vector<8x128xf32>
    %24 = arith.divf %22, %23 : vector<8x128xf32>
    %25 = vector.extract_strided_slice %13 {offsets = [0, 128], sizes = [8, 128], strides = [1, 1]} : vector<8x384xf32> to vector<8x128xf32>
    %26 = vector.extract_strided_slice %16 {offsets = [0, 128], sizes = [8, 128], strides = [1, 1]} : vector<8x384xf32> to vector<8x128xf32>
    %27 = arith.addf %25, %26 : vector<8x128xf32>
    %28 = arith.negf %27 : vector<8x128xf32>
    %29 = math.exp %28 : vector<8x128xf32>
    %cst_15 = arith.constant 1.000000e+00 : f32
    %30 = vector.broadcast %cst_15 : f32 to vector<8x128xf32>
    %31 = arith.addf %30, %29 : vector<8x128xf32>
    %32 = arith.divf %30, %31 : vector<8x128xf32>
    %33 = vector.extract_strided_slice %13 {offsets = [0, 256], sizes = [8, 128], strides = [1, 1]} : vector<8x384xf32> to vector<8x128xf32>
    %34 = vector.extract_strided_slice %16 {offsets = [0, 256], sizes = [8, 128], strides = [1, 1]} : vector<8x384xf32> to vector<8x128xf32>
    %35 = arith.mulf %24, %34 : vector<8x128xf32>
    %36 = arith.addf %33, %35 : vector<8x128xf32>
    %37 = math.tanh %36 : vector<8x128xf32>
    %cst_16 = arith.constant 1.000000e+00 : f32
    %38 = vector.broadcast %cst_16 : f32 to vector<8x128xf32>
    %39 = arith.subf %38, %32 : vector<8x128xf32>
    %40 = arith.mulf %39, %37 : vector<8x128xf32>
    %41 = arith.mulf %32, %9 : vector<8x128xf32>
    %42 = arith.addf %40, %41 : vector<8x128xf32>
    %43 = arith.index_cast %11 : i32 to index
    %c0_17 = arith.constant 0 : index
    %44 = vector.load %arg5[%43, %c0_17] : memref<64x128xf32, #tpu.memory_space<vmem>>, vector<8x128xf32>
    tpu.vector_store %arg5[%43, %c0_17], %42 {strides = array<i32>} : memref<64x128xf32, #tpu.memory_space<vmem>>, vector<8x128xf32>,
    %c1_i32 = arith.constant 1 : i32
    %c8_i32_18 = arith.constant 8 : i32
    %45 = arith.muli %c1_i32, %c8_i32_18 : i32
    %46 = tpu.assume_multiple %45, 8 : i32
    %47 = arith.index_cast %46 : i32 to index
    %c0_19 = arith.constant 0 : index
    %48 = vector.load %arg7[%47, %c0_19] : memref<64x384xf32, #tpu.memory_space<vmem>>, vector<8x384xf32>
    %cst_20 = arith.constant dense<0.000000e+00> : vector<8x384xf32>
    %49 = tpu.matmul %42, %7, %cst_20 {dimension_numbers = #tpu.dot_dimension_numbers<[1], [0], [0], [1], [0, 0, 1, 1], [], []>} : vector<8x128xf32>, vector<128x384xf32>, vector<8x384xf32> -> vector<8x384xf32>
    %50 = vector.broadcast %8 : vector<1x384xf32> to vector<8x384xf32>
    %51 = arith.addf %49, %50 : vector<8x384xf32>
    %52 = vector.extract_strided_slice %48 {offsets = [0, 0], sizes = [8, 128], strides = [1, 1]} : vector<8x384xf32> to vector<8x128xf32>
    %53 = vector.extract_strided_slice %51 {offsets = [0, 0], sizes = [8, 128], strides = [1, 1]} : vector<8x384xf32> to vector<8x128xf32>
    %54 = arith.addf %52, %53 : vector<8x128xf32>
    %55 = arith.negf %54 : vector<8x128xf32>
    %56 = math.exp %55 : vector<8x128xf32>
    %cst_21 = arith.constant 1.000000e+00 : f32
    %57 = vector.broadcast %cst_21 : f32 to vector<8x128xf32>
    %58 = arith.addf %57, %56 : vector<8x128xf32>
    %59 = arith.divf %57, %58 : vector<8x128xf32>
    %60 = vector.extract_strided_slice %48 {offsets = [0, 128], sizes = [8, 128], strides = [1, 1]} : vector<8x384xf32> to vector<8x128xf32>
    %61 = vector.extract_strided_slice %51 {offsets = [0, 128], sizes = [8, 128], strides = [1, 1]} : vector<8x384xf32> to vector<8x128xf32>
    %62 = arith.addf %60, %61 : vector<8x128xf32>
    %63 = arith.negf %62 : vector<8x128xf32>
    %64 = math.exp %63 : vector<8x128xf32>
    %cst_22 = arith.constant 1.000000e+00 : f32
    %65 = vector.broadcast %cst_22 : f32 to vector<8x128xf32>
    %66 = arith.addf %65, %64 : vector<8x128xf32>
    %67 = arith.divf %65, %66 : vector<8x128xf32>
    %68 = vector.extract_strided_slice %48 {offsets = [0, 256], sizes = [8, 128], strides = [1, 1]} : vector<8x384xf32> to vector<8x128xf32>
    %69 = vector.extract_strided_slice %51 {offsets = [0, 256], sizes = [8, 128], strides = [1, 1]} : vector<8x384xf32> to vector<8x128xf32>
    %70 = arith.mulf %59, %69 : vector<8x128xf32>
    %71 = arith.addf %68, %70 : vector<8x128xf32>
    %72 = math.tanh %71 : vector<8x128xf32>
    %cst_23 = arith.constant 1.000000e+00 : f32
    %73 = vector.broadcast %cst_23 : f32 to vector<8x128xf32>
    %74 = arith.subf %73, %67 : vector<8x128xf32>
    %75 = arith.mulf %74, %72 : vector<8x128xf32>
    %76 = arith.mulf %67, %42 : vector<8x128xf32>
    %77 = arith.addf %75, %76 : vector<8x128xf32>
    %78 = arith.index_cast %46 : i32 to index
    %c0_24 = arith.constant 0 : index
    %79 = vector.load %arg5[%78, %c0_24] : memref<64x128xf32, #tpu.memory_space<vmem>>, vector<8x128xf32>
    tpu.vector_store %arg5[%78, %c0_24], %77 {strides = array<i32>} : memref<64x128xf32, #tpu.memory_space<vmem>>, vector<8x128xf32>,
    %c2_i32 = arith.constant 2 : i32
    %c8_i32_25 = arith.constant 8 : i32
    %80 = arith.muli %c2_i32, %c8_i32_25 : i32
    %81 = tpu.assume_multiple %80, 8 : i32
    %82 = arith.index_cast %81 : i32 to index
    %c0_26 = arith.constant 0 : index
    %83 = vector.load %arg7[%82, %c0_26] : memref<64x384xf32, #tpu.memory_space<vmem>>, vector<8x384xf32>
    %cst_27 = arith.constant dense<0.000000e+00> : vector<8x384xf32>
    %84 = tpu.matmul %77, %7, %cst_27 {dimension_numbers = #tpu.dot_dimension_numbers<[1], [0], [0], [1], [0, 0, 1, 1], [], []>} : vector<8x128xf32>, vector<128x384xf32>, vector<8x384xf32> -> vector<8x384xf32>
    %85 = vector.broadcast %8 : vector<1x384xf32> to vector<8x384xf32>
    %86 = arith.addf %84, %85 : vector<8x384xf32>
    %87 = vector.extract_strided_slice %83 {offsets = [0, 0], sizes = [8, 128], strides = [1, 1]} : vector<8x384xf32> to vector<8x128xf32>
    %88 = vector.extract_strided_slice %86 {offsets = [0, 0], sizes = [8, 128], strides = [1, 1]} : vector<8x384xf32> to vector<8x128xf32>
    %89 = arith.addf %87, %88 : vector<8x128xf32>
    %90 = arith.negf %89 : vector<8x128xf32>
    %91 = math.exp %90 : vector<8x128xf32>
    %cst_28 = arith.constant 1.000000e+00 : f32
    %92 = vector.broadcast %cst_28 : f32 to vector<8x128xf32>
    %93 = arith.addf %92, %91 : vector<8x128xf32>
    %94 = arith.divf %92, %93 : vector<8x128xf32>
    %95 = vector.extract_strided_slice %83 {offsets = [0, 128], sizes = [8, 128], strides = [1, 1]} : vector<8x384xf32> to vector<8x128xf32>
    %96 = vector.extract_strided_slice %86 {offsets = [0, 128], sizes = [8, 128], strides = [1, 1]} : vector<8x384xf32> to vector<8x128xf32>
    %97 = arith.addf %95, %96 : vector<8x128xf32>
    %98 = arith.negf %97 : vector<8x128xf32>
    %99 = math.exp %98 : vector<8x128xf32>
    %cst_29 = arith.constant 1.000000e+00 : f32
    %100 = vector.broadcast %cst_29 : f32 to vector<8x128xf32>
    %101 = arith.addf %100, %99 : vector<8x128xf32>
    %102 = arith.divf %100, %101 : vector<8x128xf32>
    %103 = vector.extract_strided_slice %83 {offsets = [0, 256], sizes = [8, 128], strides = [1, 1]} : vector<8x384xf32> to vector<8x128xf32>
    %104 = vector.extract_strided_slice %86 {offsets = [0, 256], sizes = [8, 128], strides = [1, 1]} : vector<8x384xf32> to vector<8x128xf32>
    %105 = arith.mulf %94, %104 : vector<8x128xf32>
    %106 = arith.addf %103, %105 : vector<8x128xf32>
    %107 = math.tanh %106 : vector<8x128xf32>
    %cst_30 = arith.constant 1.000000e+00 : f32
    %108 = vector.broadcast %cst_30 : f32 to vector<8x128xf32>
    %109 = arith.subf %108, %102 : vector<8x128xf32>
    %110 = arith.mulf %109, %107 : vector<8x128xf32>
    %111 = arith.mulf %102, %77 : vector<8x128xf32>
    %112 = arith.addf %110, %111 : vector<8x128xf32>
    %113 = arith.index_cast %81 : i32 to index
    %c0_31 = arith.constant 0 : index
    %114 = vector.load %arg5[%113, %c0_31] : memref<64x128xf32, #tpu.memory_space<vmem>>, vector<8x128xf32>
    tpu.vector_store %arg5[%113, %c0_31], %112 {strides = array<i32>} : memref<64x128xf32, #tpu.memory_space<vmem>>, vector<8x128xf32>,
    %c3_i32 = arith.constant 3 : i32
    %c8_i32_32 = arith.constant 8 : i32
    %115 = arith.muli %c3_i32, %c8_i32_32 : i32
    %116 = tpu.assume_multiple %115, 8 : i32
    %117 = arith.index_cast %116 : i32 to index
    %c0_33 = arith.constant 0 : index
    %118 = vector.load %arg7[%117, %c0_33] : memref<64x384xf32, #tpu.memory_space<vmem>>, vector<8x384xf32>
    %cst_34 = arith.constant dense<0.000000e+00> : vector<8x384xf32>
    %119 = tpu.matmul %112, %7, %cst_34 {dimension_numbers = #tpu.dot_dimension_numbers<[1], [0], [0], [1], [0, 0, 1, 1], [], []>} : vector<8x128xf32>, vector<128x384xf32>, vector<8x384xf32> -> vector<8x384xf32>
    %120 = vector.broadcast %8 : vector<1x384xf32> to vector<8x384xf32>
    %121 = arith.addf %119, %120 : vector<8x384xf32>
    %122 = vector.extract_strided_slice %118 {offsets = [0, 0], sizes = [8, 128], strides = [1, 1]} : vector<8x384xf32> to vector<8x128xf32>
    %123 = vector.extract_strided_slice %121 {offsets = [0, 0], sizes = [8, 128], strides = [1, 1]} : vector<8x384xf32> to vector<8x128xf32>
    %124 = arith.addf %122, %123 : vector<8x128xf32>
    %125 = arith.negf %124 : vector<8x128xf32>
    %126 = math.exp %125 : vector<8x128xf32>
    %cst_35 = arith.constant 1.000000e+00 : f32
    %127 = vector.broadcast %cst_35 : f32 to vector<8x128xf32>
    %128 = arith.addf %127, %126 : vector<8x128xf32>
    %129 = arith.divf %127, %128 : vector<8x128xf32>
    %130 = vector.extract_strided_slice %118 {offsets = [0, 128], sizes = [8, 128], strides = [1, 1]} : vector<8x384xf32> to vector<8x128xf32>
    %131 = vector.extract_strided_slice %121 {offsets = [0, 128], sizes = [8, 128], strides = [1, 1]} : vector<8x384xf32> to vector<8x128xf32>
    %132 = arith.addf %130, %131 : vector<8x128xf32>
    %133 = arith.negf %132 : vector<8x128xf32>
    %134 = math.exp %133 : vector<8x128xf32>
    %cst_36 = arith.constant 1.000000e+00 : f32
    %135 = vector.broadcast %cst_36 : f32 to vector<8x128xf32>
    %136 = arith.addf %135, %134 : vector<8x128xf32>
    %137 = arith.divf %135, %136 : vector<8x128xf32>
    %138 = vector.extract_strided_slice %118 {offsets = [0, 256], sizes = [8, 128], strides = [1, 1]} : vector<8x384xf32> to vector<8x128xf32>
    %139 = vector.extract_strided_slice %121 {offsets = [0, 256], sizes = [8, 128], strides = [1, 1]} : vector<8x384xf32> to vector<8x128xf32>
    %140 = arith.mulf %129, %139 : vector<8x128xf32>
    %141 = arith.addf %138, %140 : vector<8x128xf32>
    %142 = math.tanh %141 : vector<8x128xf32>
    %cst_37 = arith.constant 1.000000e+00 : f32
    %143 = vector.broadcast %cst_37 : f32 to vector<8x128xf32>
    %144 = arith.subf %143, %137 : vector<8x128xf32>
    %145 = arith.mulf %144, %142 : vector<8x128xf32>
    %146 = arith.mulf %137, %112 : vector<8x128xf32>
    %147 = arith.addf %145, %146 : vector<8x128xf32>
    %148 = arith.index_cast %116 : i32 to index
    %c0_38 = arith.constant 0 : index
    %149 = vector.load %arg5[%148, %c0_38] : memref<64x128xf32, #tpu.memory_space<vmem>>, vector<8x128xf32>
    tpu.vector_store %arg5[%148, %c0_38], %147 {strides = array<i32>} : memref<64x128xf32, #tpu.memory_space<vmem>>, vector<8x128xf32>,
    %c4_i32 = arith.constant 4 : i32
    %c8_i32_39 = arith.constant 8 : i32
    %150 = arith.muli %c4_i32, %c8_i32_39 : i32
    %151 = tpu.assume_multiple %150, 8 : i32
    %152 = arith.index_cast %151 : i32 to index
    %c0_40 = arith.constant 0 : index
    %153 = vector.load %arg7[%152, %c0_40] : memref<64x384xf32, #tpu.memory_space<vmem>>, vector<8x384xf32>
    %cst_41 = arith.constant dense<0.000000e+00> : vector<8x384xf32>
    %154 = tpu.matmul %147, %7, %cst_41 {dimension_numbers = #tpu.dot_dimension_numbers<[1], [0], [0], [1], [0, 0, 1, 1], [], []>} : vector<8x128xf32>, vector<128x384xf32>, vector<8x384xf32> -> vector<8x384xf32>
    %155 = vector.broadcast %8 : vector<1x384xf32> to vector<8x384xf32>
    %156 = arith.addf %154, %155 : vector<8x384xf32>
    %157 = vector.extract_strided_slice %153 {offsets = [0, 0], sizes = [8, 128], strides = [1, 1]} : vector<8x384xf32> to vector<8x128xf32>
    %158 = vector.extract_strided_slice %156 {offsets = [0, 0], sizes = [8, 128], strides = [1, 1]} : vector<8x384xf32> to vector<8x128xf32>
    %159 = arith.addf %157, %158 : vector<8x128xf32>
    %160 = arith.negf %159 : vector<8x128xf32>
    %161 = math.exp %160 : vector<8x128xf32>
    %cst_42 = arith.constant 1.000000e+00 : f32
    %162 = vector.broadcast %cst_42 : f32 to vector<8x128xf32>
    %163 = arith.addf %162, %161 : vector<8x128xf32>
    %164 = arith.divf %162, %163 : vector<8x128xf32>
    %165 = vector.extract_strided_slice %153 {offsets = [0, 128], sizes = [8, 128], strides = [1, 1]} : vector<8x384xf32> to vector<8x128xf32>
    %166 = vector.extract_strided_slice %156 {offsets = [0, 128], sizes = [8, 128], strides = [1, 1]} : vector<8x384xf32> to vector<8x128xf32>
    %167 = arith.addf %165, %166 : vector<8x128xf32>
    %168 = arith.negf %167 : vector<8x128xf32>
    %169 = math.exp %168 : vector<8x128xf32>
    %cst_43 = arith.constant 1.000000e+00 : f32
    %170 = vector.broadcast %cst_43 : f32 to vector<8x128xf32>
    %171 = arith.addf %170, %169 : vector<8x128xf32>
    %172 = arith.divf %170, %171 : vector<8x128xf32>
    %173 = vector.extract_strided_slice %153 {offsets = [0, 256], sizes = [8, 128], strides = [1, 1]} : vector<8x384xf32> to vector<8x128xf32>
    %174 = vector.extract_strided_slice %156 {offsets = [0, 256], sizes = [8, 128], strides = [1, 1]} : vector<8x384xf32> to vector<8x128xf32>
    %175 = arith.mulf %164, %174 : vector<8x128xf32>
    %176 = arith.addf %173, %175 : vector<8x128xf32>
    %177 = math.tanh %176 : vector<8x128xf32>
    %cst_44 = arith.constant 1.000000e+00 : f32
    %178 = vector.broadcast %cst_44 : f32 to vector<8x128xf32>
    %179 = arith.subf %178, %172 : vector<8x128xf32>
    %180 = arith.mulf %179, %177 : vector<8x128xf32>
    %181 = arith.mulf %172, %147 : vector<8x128xf32>
    %182 = arith.addf %180, %181 : vector<8x128xf32>
    %183 = arith.index_cast %151 : i32 to index
    %c0_45 = arith.constant 0 : index
    %184 = vector.load %arg5[%183, %c0_45] : memref<64x128xf32, #tpu.memory_space<vmem>>, vector<8x128xf32>
    tpu.vector_store %arg5[%183, %c0_45], %182 {strides = array<i32>} : memref<64x128xf32, #tpu.memory_space<vmem>>, vector<8x128xf32>,
    %c5_i32 = arith.constant 5 : i32
    %c8_i32_46 = arith.constant 8 : i32
    %185 = arith.muli %c5_i32, %c8_i32_46 : i32
    %186 = tpu.assume_multiple %185, 8 : i32
    %187 = arith.index_cast %186 : i32 to index
    %c0_47 = arith.constant 0 : index
    %188 = vector.load %arg7[%187, %c0_47] : memref<64x384xf32, #tpu.memory_space<vmem>>, vector<8x384xf32>
    %cst_48 = arith.constant dense<0.000000e+00> : vector<8x384xf32>
    %189 = tpu.matmul %182, %7, %cst_48 {dimension_numbers = #tpu.dot_dimension_numbers<[1], [0], [0], [1], [0, 0, 1, 1], [], []>} : vector<8x128xf32>, vector<128x384xf32>, vector<8x384xf32> -> vector<8x384xf32>
    %190 = vector.broadcast %8 : vector<1x384xf32> to vector<8x384xf32>
    %191 = arith.addf %189, %190 : vector<8x384xf32>
    %192 = vector.extract_strided_slice %188 {offsets = [0, 0], sizes = [8, 128], strides = [1, 1]} : vector<8x384xf32> to vector<8x128xf32>
    %193 = vector.extract_strided_slice %191 {offsets = [0, 0], sizes = [8, 128], strides = [1, 1]} : vector<8x384xf32> to vector<8x128xf32>
    %194 = arith.addf %192, %193 : vector<8x128xf32>
    %195 = arith.negf %194 : vector<8x128xf32>
    %196 = math.exp %195 : vector<8x128xf32>
    %cst_49 = arith.constant 1.000000e+00 : f32
    %197 = vector.broadcast %cst_49 : f32 to vector<8x128xf32>
    %198 = arith.addf %197, %196 : vector<8x128xf32>
    %199 = arith.divf %197, %198 : vector<8x128xf32>
    %200 = vector.extract_strided_slice %188 {offsets = [0, 128], sizes = [8, 128], strides = [1, 1]} : vector<8x384xf32> to vector<8x128xf32>
    %201 = vector.extract_strided_slice %191 {offsets = [0, 128], sizes = [8, 128], strides = [1, 1]} : vector<8x384xf32> to vector<8x128xf32>
    %202 = arith.addf %200, %201 : vector<8x128xf32>
    %203 = arith.negf %202 : vector<8x128xf32>
    %204 = math.exp %203 : vector<8x128xf32>
    %cst_50 = arith.constant 1.000000e+00 : f32
    %205 = vector.broadcast %cst_50 : f32 to vector<8x128xf32>
    %206 = arith.addf %205, %204 : vector<8x128xf32>
    %207 = arith.divf %205, %206 : vector<8x128xf32>
    %208 = vector.extract_strided_slice %188 {offsets = [0, 256], sizes = [8, 128], strides = [1, 1]} : vector<8x384xf32> to vector<8x128xf32>
    %209 = vector.extract_strided_slice %191 {offsets = [0, 256], sizes = [8, 128], strides = [1, 1]} : vector<8x384xf32> to vector<8x128xf32>
    %210 = arith.mulf %199, %209 : vector<8x128xf32>
    %211 = arith.addf %208, %210 : vector<8x128xf32>
    %212 = math.tanh %211 : vector<8x128xf32>
    %cst_51 = arith.constant 1.000000e+00 : f32
    %213 = vector.broadcast %cst_51 : f32 to vector<8x128xf32>
    %214 = arith.subf %213, %207 : vector<8x128xf32>
    %215 = arith.mulf %214, %212 : vector<8x128xf32>
    %216 = arith.mulf %207, %182 : vector<8x128xf32>
    %217 = arith.addf %215, %216 : vector<8x128xf32>
    %218 = arith.index_cast %186 : i32 to index
    %c0_52 = arith.constant 0 : index
    %219 = vector.load %arg5[%218, %c0_52] : memref<64x128xf32, #tpu.memory_space<vmem>>, vector<8x128xf32>
    tpu.vector_store %arg5[%218, %c0_52], %217 {strides = array<i32>} : memref<64x128xf32, #tpu.memory_space<vmem>>, vector<8x128xf32>,
    %c6_i32 = arith.constant 6 : i32
    %c8_i32_53 = arith.constant 8 : i32
    %220 = arith.muli %c6_i32, %c8_i32_53 : i32
    %221 = tpu.assume_multiple %220, 8 : i32
    %222 = arith.index_cast %221 : i32 to index
    %c0_54 = arith.constant 0 : index
    %223 = vector.load %arg7[%222, %c0_54] : memref<64x384xf32, #tpu.memory_space<vmem>>, vector<8x384xf32>
    %cst_55 = arith.constant dense<0.000000e+00> : vector<8x384xf32>
    %224 = tpu.matmul %217, %7, %cst_55 {dimension_numbers = #tpu.dot_dimension_numbers<[1], [0], [0], [1], [0, 0, 1, 1], [], []>} : vector<8x128xf32>, vector<128x384xf32>, vector<8x384xf32> -> vector<8x384xf32>
    %225 = vector.broadcast %8 : vector<1x384xf32> to vector<8x384xf32>
    %226 = arith.addf %224, %225 : vector<8x384xf32>
    %227 = vector.extract_strided_slice %223 {offsets = [0, 0], sizes = [8, 128], strides = [1, 1]} : vector<8x384xf32> to vector<8x128xf32>
    %228 = vector.extract_strided_slice %226 {offsets = [0, 0], sizes = [8, 128], strides = [1, 1]} : vector<8x384xf32> to vector<8x128xf32>
    %229 = arith.addf %227, %228 : vector<8x128xf32>
    %230 = arith.negf %229 : vector<8x128xf32>
    %231 = math.exp %230 : vector<8x128xf32>
    %cst_56 = arith.constant 1.000000e+00 : f32
    %232 = vector.broadcast %cst_56 : f32 to vector<8x128xf32>
    %233 = arith.addf %232, %231 : vector<8x128xf32>
    %234 = arith.divf %232, %233 : vector<8x128xf32>
    %235 = vector.extract_strided_slice %223 {offsets = [0, 128], sizes = [8, 128], strides = [1, 1]} : vector<8x384xf32> to vector<8x128xf32>
    %236 = vector.extract_strided_slice %226 {offsets = [0, 128], sizes = [8, 128], strides = [1, 1]} : vector<8x384xf32> to vector<8x128xf32>
    %237 = arith.addf %235, %236 : vector<8x128xf32>
    %238 = arith.negf %237 : vector<8x128xf32>
    %239 = math.exp %238 : vector<8x128xf32>
    %cst_57 = arith.constant 1.000000e+00 : f32
    %240 = vector.broadcast %cst_57 : f32 to vector<8x128xf32>
    %241 = arith.addf %240, %239 : vector<8x128xf32>
    %242 = arith.divf %240, %241 : vector<8x128xf32>
    %243 = vector.extract_strided_slice %223 {offsets = [0, 256], sizes = [8, 128], strides = [1, 1]} : vector<8x384xf32> to vector<8x128xf32>
    %244 = vector.extract_strided_slice %226 {offsets = [0, 256], sizes = [8, 128], strides = [1, 1]} : vector<8x384xf32> to vector<8x128xf32>
    %245 = arith.mulf %234, %244 : vector<8x128xf32>
    %246 = arith.addf %243, %245 : vector<8x128xf32>
    %247 = math.tanh %246 : vector<8x128xf32>
    %cst_58 = arith.constant 1.000000e+00 : f32
    %248 = vector.broadcast %cst_58 : f32 to vector<8x128xf32>
    %249 = arith.subf %248, %242 : vector<8x128xf32>
    %250 = arith.mulf %249, %247 : vector<8x128xf32>
    %251 = arith.mulf %242, %217 : vector<8x128xf32>
    %252 = arith.addf %250, %251 : vector<8x128xf32>
    %253 = arith.index_cast %221 : i32 to index
    %c0_59 = arith.constant 0 : index
    %254 = vector.load %arg5[%253, %c0_59] : memref<64x128xf32, #tpu.memory_space<vmem>>, vector<8x128xf32>
    tpu.vector_store %arg5[%253, %c0_59], %252 {strides = array<i32>} : memref<64x128xf32, #tpu.memory_space<vmem>>, vector<8x128xf32>,
    %c7_i32 = arith.constant 7 : i32
    %c8_i32_60 = arith.constant 8 : i32
    %255 = arith.muli %c7_i32, %c8_i32_60 : i32
    %256 = tpu.assume_multiple %255, 8 : i32
    %257 = arith.index_cast %256 : i32 to index
    %c0_61 = arith.constant 0 : index
    %258 = vector.load %arg7[%257, %c0_61] : memref<64x384xf32, #tpu.memory_space<vmem>>, vector<8x384xf32>
    %cst_62 = arith.constant dense<0.000000e+00> : vector<8x384xf32>
    %259 = tpu.matmul %252, %7, %cst_62 {dimension_numbers = #tpu.dot_dimension_numbers<[1], [0], [0], [1], [0, 0, 1, 1], [], []>} : vector<8x128xf32>, vector<128x384xf32>, vector<8x384xf32> -> vector<8x384xf32>
    %260 = vector.broadcast %8 : vector<1x384xf32> to vector<8x384xf32>
    %261 = arith.addf %259, %260 : vector<8x384xf32>
    %262 = vector.extract_strided_slice %258 {offsets = [0, 0], sizes = [8, 128], strides = [1, 1]} : vector<8x384xf32> to vector<8x128xf32>
    %263 = vector.extract_strided_slice %261 {offsets = [0, 0], sizes = [8, 128], strides = [1, 1]} : vector<8x384xf32> to vector<8x128xf32>
    %264 = arith.addf %262, %263 : vector<8x128xf32>
    %265 = arith.negf %264 : vector<8x128xf32>
    %266 = math.exp %265 : vector<8x128xf32>
    %cst_63 = arith.constant 1.000000e+00 : f32
    %267 = vector.broadcast %cst_63 : f32 to vector<8x128xf32>
    %268 = arith.addf %267, %266 : vector<8x128xf32>
    %269 = arith.divf %267, %268 : vector<8x128xf32>
    %270 = vector.extract_strided_slice %258 {offsets = [0, 128], sizes = [8, 128], strides = [1, 1]} : vector<8x384xf32> to vector<8x128xf32>
    %271 = vector.extract_strided_slice %261 {offsets = [0, 128], sizes = [8, 128], strides = [1, 1]} : vector<8x384xf32> to vector<8x128xf32>
    %272 = arith.addf %270, %271 : vector<8x128xf32>
    %273 = arith.negf %272 : vector<8x128xf32>
    %274 = math.exp %273 : vector<8x128xf32>
    %cst_64 = arith.constant 1.000000e+00 : f32
    %275 = vector.broadcast %cst_64 : f32 to vector<8x128xf32>
    %276 = arith.addf %275, %274 : vector<8x128xf32>
    %277 = arith.divf %275, %276 : vector<8x128xf32>
    %278 = vector.extract_strided_slice %258 {offsets = [0, 256], sizes = [8, 128], strides = [1, 1]} : vector<8x384xf32> to vector<8x128xf32>
    %279 = vector.extract_strided_slice %261 {offsets = [0, 256], sizes = [8, 128], strides = [1, 1]} : vector<8x384xf32> to vector<8x128xf32>
    %280 = arith.mulf %269, %279 : vector<8x128xf32>
    %281 = arith.addf %278, %280 : vector<8x128xf32>
    %282 = math.tanh %281 : vector<8x128xf32>
    %cst_65 = arith.constant 1.000000e+00 : f32
    %283 = vector.broadcast %cst_65 : f32 to vector<8x128xf32>
    %284 = arith.subf %283, %277 : vector<8x128xf32>
    %285 = arith.mulf %284, %282 : vector<8x128xf32>
    %286 = arith.mulf %277, %252 : vector<8x128xf32>
    %287 = arith.addf %285, %286 : vector<8x128xf32>
    %288 = arith.index_cast %256 : i32 to index
    %c0_66 = arith.constant 0 : index
    %289 = vector.load %arg5[%288, %c0_66] : memref<64x128xf32, #tpu.memory_space<vmem>>, vector<8x128xf32>
    tpu.vector_store %arg5[%288, %c0_66], %287 {strides = array<i32>} : memref<64x128xf32, #tpu.memory_space<vmem>>, vector<8x128xf32>,
    %c8_i32_67 = arith.constant 8 : i32
    %c0_68 = arith.constant 0 : index
    %c0_69 = arith.constant 0 : index
    %290 = vector.load %arg6[%c0_68, %c0_69] : memref<8x128xf32, #tpu.memory_space<vmem>>, vector<8x128xf32>
    tpu.vector_store %arg6[%c0_68, %c0_69], %287 {strides = array<i32>} : memref<8x128xf32, #tpu.memory_space<vmem>>, vector<8x128xf32>,
    return
  }
}

</mosaic_0001>

<llo_original>
// kernel: gru_encoder.1
$region0: #{gru_encoder.1}
  #allocation0 [shape = 'u32[]', space=smem, size = 0x4, offset = 0x4, fixed_abs, tag = 'smem constant byte address 0x4 - core index']
  #allocation1 [shape = 'u32[144,128]{1,0:T(1,128)}', space=vmem, size = 0x12000, scoped, tag = 'internal scratch']
  #allocation2 [shape = 'f32[64,384]{1,0:T(8,128)}', space=vmem, size = 0x18000, scoped, tag = 'scratch operand']
  %s0 = inlined_call_operand.vmem [shape: f32[64,32], index: 0, kind: input, shape index: {}]
  %s1 = inlined_call_operand.vmem [shape: f32[32,384], index: 1, kind: input, shape index: {}]
  %s2 = inlined_call_operand.vmem [shape: f32[128,384], index: 2, kind: input, shape index: {}]
  %s3 = inlined_call_operand.vmem [shape: f32[1,384], index: 3, kind: input, shape index: {}]
  %s4 = inlined_call_operand.vmem [shape: f32[1,384], index: 4, kind: input, shape index: {}]
  %s5 = inlined_call_operand.vmem [shape: f32[64,128], index: 5, kind: output, shape index: {0}]
  %s6 = inlined_call_operand.vmem [shape: f32[8,128], index: 6, kind: output, shape index: {1}]
  %7 = xla_tuple %s5, %s6
  %s8 = sld [smem:[#allocation0]]
  $region38: #{gru_encoder.1} parent=0
    _
  %s10 = ssub.s32 1, %s8
  %s11 = scalar_select 0, %s10, %s8
  // Predicated region
  $region2: #{gru_encoder.1} parent=0 // pred_check
    _
  $region3: #{gru_encoder.1} parent=0 // pred_check_branch
    %13 = sbr.rel (0) target = $region5
  $region4: #{gru_encoder.1} parent=0 // pred_region
    _
  $region5: #{gru_encoder.1} parent=0 // pred_fallthru
    _
  // Predicated region
  $region6: #{gru_encoder.1} parent=0 // pred_check
    _
  $region7: #{gru_encoder.1} parent=0 // pred_check_branch
    %15 = sbr.rel (0) target = $region9
  $region8: #{gru_encoder.1} parent=0 // pred_region
    _
  $region9: #{gru_encoder.1} parent=0 // pred_fallthru
    _
  // Predicated region
  $region10: #{gru_encoder.1} parent=0 // pred_check
    _
  $region11: #{gru_encoder.1} parent=0 // pred_check_branch
    %17 = sbr.rel (0) target = $region13
  $region12: #{gru_encoder.1} parent=0 // pred_region
    _
  $region13: #{gru_encoder.1} parent=0 // pred_fallthru
    _
  // Predicated region
  $region14: #{gru_encoder.1} parent=0 // pred_check
    _
  $region15: #{gru_encoder.1} parent=0 // pred_check_branch
    %19 = sbr.rel (0) target = $region17
  $region16: #{gru_encoder.1} parent=0 // pred_region
    _
  $region17: #{gru_encoder.1} parent=0 // pred_fallthru
    _
  // Predicated region
  $region18: #{gru_encoder.1} parent=0 // pred_check
    _
  $region19: #{gru_encoder.1} parent=0 // pred_check_branch
    %21 = sbr.rel (0) target = $region21
  $region20: #{gru_encoder.1} parent=0 // pred_region
    _
  $region21: #{gru_encoder.1} parent=0 // pred_fallthru
    _
  %v22 = vld [vmem:[%s0] sm:$0xff]
  %v23 = vld [vmem:[%s0 + $0x8] sm:$0xff]
  %v24 = vld [vmem:[%s0 + $0x10] sm:$0xff]
  %v25 = vld [vmem:[%s0 + $0x18] sm:$0xff]
  %v26 = vld [vmem:[%s0 + $0x20] sm:$0xff]
  %v27 = vld [vmem:[%s0 + $0x28] sm:$0xff]
  %v28 = vld [vmem:[%s0 + $0x30] sm:$0xff]
  %v29 = vld [vmem:[%s0 + $0x38] sm:$0xff]
  %v30 = vld [vmem:[%s1] sm:$0xff]
  %v31 = vld [vmem:[%s1 + $0x8] sm:$0xff]
  %v32 = vld [vmem:[%s1 + $0x10] sm:$0xff]
  %v33 = vld [vmem:[%s1 + $0x18] sm:$0xff]
  %v34 = vld [vmem:[%s1 + $0x20] sm:$0xff]
  %v35 = vld [vmem:[%s1 + $0x28] sm:$0xff]
  %v36 = vld [vmem:[%s1 + $0x30] sm:$0xff]
  %v37 = vld [vmem:[%s1 + $0x38] sm:$0xff]
  %v38 = vld [vmem:[%s1 + $0x40] sm:$0xff]
  %v39 = vld [vmem:[%s1 + $0x48] sm:$0xff]
  %v40 = vld [vmem:[%s1 + $0x50] sm:$0xff]
  %v41 = vld [vmem:[%s1 + $0x58] sm:$0xff]
  %v42 = vld [vmem:[%s3] sm:$0x7]
  %v44 = vlaneseq
  %v45 = vshrl.u32 %v44, 7
  %v46 = vsub.s32 0, %v45
  %v47 = vrot.slane %v42, %v46
  %v48 = vlaneseq
  %v49 = vshrl.u32 %v48, 7
  %v50 = vsub.s32 1, %v49
  %v51 = vrot.slane %v42, %v50
  %v52 = vlaneseq
  %v53 = vshrl.u32 %v52, 7
  %v54 = vsub.s32 2, %v53
  %v55 = vrot.slane %v42, %v54
  %vm59 = vcmask 261120
  %v61 = vsel %vm59, %v22, 0
  %v64 = vsel %vm59, %v23, 0
  %v67 = vsel %vm59, %v24, 0
  %v70 = vsel %vm59, %v25, 0
  %v73 = vsel %vm59, %v26, 0
  %v76 = vsel %vm59, %v27, 0
  %v79 = vsel %vm59, %v28, 0
  %v82 = vsel %vm59, %v29, 0
  %84 = vmatprep.subr.mxu0 %v31
  %85 = vmatpush1.msra.mxu0 %v30
  %86 = vmatprep.subr.mxu0 %v34
  %87 = vmatpush1.msra.mxu0 %v33
  %88 = vmatprep.subr.mxu0 %v37
  %89 = vmatpush1.msra.mxu0 %v36
  %90 = vmatprep.subr.mxu0 %v40
  %91 = vmatpush1.msra.mxu0 %v39
  %92 = vmatprep.subr.mxu0 0.0
  %93 = vmatpush1.msra.mxu0 0.0
  %94 = vmatprep.subr.mxu0 0.0
  %95 = vmatpush1.msra.mxu0 0.0
  %96 = vmatprep.subr.mxu0 0.0
  %97 = vmatpush1.msra.mxu0 0.0
  %98 = vmatprep.subr.mxu0 0.0
  %99 = vmatpush1.msra.mxu0 0.0
  %100 = vmatprep.subr.mxu0 0.0
  %101 = vmatpush1.msra.mxu0 0.0
  %102 = vmatprep.subr.mxu0 0.0
  %103 = vmatpush1.msra.mxu0 0.0
  %104 = vmatprep.subr.mxu0 0.0
  %105 = vmatpush1.msra.mxu0 0.0
  %106 = vmatprep.subr.mxu0 0.0
  %107 = vmatpush1.msra.mxu0 0.0
  %108 = vmatprep.subr.mxu0 0.0
  %109 = vmatpush1.msra.mxu0 0.0
  %110 = vmatprep.subr.mxu0 0.0
  %111 = vmatpush1.msra.mxu0 0.0
  %112 = vmatprep.subr.mxu0 0.0
  %113 = vmatpush1.msra.mxu0 0.0
  %114 = vmatprep.subr.mxu0 0.0
  %115 = vmatpush1.msra.mxu0 0.0
  %116 = vmatprep.subr.mxu0 0.0
  %117 = vmatpush1.msra.mxu0 0.0
  %118 = vmatprep.subr.mxu0 0.0
  %119 = vmatpush1.msra.mxu0 0.0
  %120 = vmatprep.subr.mxu0 0.0
  %121 = vmatpush1.msra.mxu0 0.0
  %122 = vmatprep.subr.mxu0 0.0
  %123 = vmatpush1.msra.mxu0 0.0
  %124 = vmatprep.subr.mxu0 0.0
  %125 = vmatpush1.msra.mxu0 0.0
  %126 = vmatprep.subr.mxu0 0.0
  %127 = vmatpush1.msra.mxu0 0.0
  %128 = vmatprep.subr.mxu0 0.0
  %129 = vmatpush1.msra.mxu0 0.0
  %130 = vmatprep.subr.mxu0 0.0
  %131 = vmatpush1.msra.mxu0 0.0
  %132 = vmatprep.subr.mxu0 0.0
  %133 = vmatpush1.msra.mxu0 0.0
  %134 = vmatprep.subr.mxu0 0.0
  %135 = vmatpush1.msra.mxu0 0.0
  %136 = vmatprep.subr.mxu0 0.0
  %137 = vmatpush1.msra.mxu0 0.0
  %138 = vmatprep.subr.mxu0 0.0
  %139 = vmatpush1.msra.mxu0 0.0
  %140 = vmatprep.subr.mxu0 0.0
  %141 = vmatpush1.msra.mxu0 0.0
  %142 = vmatprep.subr.mxu0 0.0
  %143 = vmatpush1.msra.mxu0 0.0
  %144 = vmatprep.subr.mxu0 0.0
  %145 = vmatpush1.msra.mxu0 0.0
  %146 = vmatprep.subr.mxu0 0.0
  %147 = vmatpush1.msra.mxu0 0.0
  %148 = vmatprep.mubr.f32.mxu0 0.0
  %149 = vmatmul.mubr.f32.gmra.mrb[0].mxu0 %v61
  %v150 = vpop.f32.mrb[0].mxu0
  %v151 = vadd.f32 %v47, %v150
  %v152 = vpop.f32.mrb[0].mxu0
  %v153 = vadd.f32 %v51, %v152
  %154 = vmatprep.mubr.f32.mxu0 0.0
  %155 = vmatmul.mubr.f32.gmra.mrb[0].mxu0 %v64
  %v156 = vpop.f32.mrb[0].mxu0
  %v157 = vadd.f32 %v47, %v156
  %v158 = vpop.f32.mrb[0].mxu0
  %v159 = vadd.f32 %v51, %v158
  %160 = vmatprep.mubr.f32.mxu0 0.0
  %161 = vmatmul.mubr.f32.gmra.mrb[0].mxu0 %v67
  %v162 = vpop.f32.mrb[0].mxu0
  %v163 = vadd.f32 %v47, %v162
  %v164 = vpop.f32.mrb[0].mxu0
  %v165 = vadd.f32 %v51, %v164
  %166 = vmatprep.mubr.f32.mxu0 0.0
  %167 = vmatmul.mubr.f32.gmra.mrb[0].mxu0 %v70
  %v168 = vpop.f32.mrb[0].mxu0
  %v169 = vadd.f32 %v47, %v168
  %v170 = vpop.f32.mrb[0].mxu0
  %v171 = vadd.f32 %v51, %v170
  %172 = vmatprep.mubr.f32.mxu0 0.0
  %173 = vmatmul.mubr.f32.gmra.mrb[0].mxu0 %v73
  %v174 = vpop.f32.mrb[0].mxu0
  %v175 = vadd.f32 %v47, %v174
  %v176 = vpop.f32.mrb[0].mxu0
  %v177 = vadd.f32 %v51, %v176
  %178 = vmatprep.mubr.f32.mxu0 0.0
  %179 = vmatmul.mubr.f32.gmra.mrb[0].mxu0 %v76
  %v180 = vpop.f32.mrb[0].mxu0
  %v181 = vadd.f32 %v47, %v180
  %v182 = vpop.f32.mrb[0].mxu0
  %v183 = vadd.f32 %v51, %v182
  %184 = vmatprep.mubr.f32.mxu0 0.0
  %185 = vmatmul.mubr.f32.gmra.mrb[0].mxu0 %v79
  %v186 = vpop.f32.mrb[0].mxu0
  %v187 = vadd.f32 %v47, %v186
  %v188 = vpop.f32.mrb[0].mxu0
  %v189 = vadd.f32 %v51, %v188
  %190 = vmatprep.mubr.f32.mxu0 0.0
  %191 = vmatmul.mubr.f32.gmra.mrb[0].mxu0 %v82
  %v192 = vpop.f32.mrb[0].mxu0
  %v193 = vadd.f32 %v47, %v192
  %v194 = vpop.f32.mrb[0].mxu0
  %v195 = vadd.f32 %v51, %v194
  %196 = vdwg.mxu0
  %197 = vmatprep.subr.mxu0 0.0
  %198 = vmatpush1.msra.mxu0 %v32
  %199 = vmatprep.subr.mxu0 0.0
  %200 = vmatpush1.msra.mxu0 %v35
  %201 = vmatprep.subr.mxu0 0.0
  %202 = vmatpush1.msra.mxu0 %v38
  %203 = vmatprep.subr.mxu0 0.0
  %204 = vmatpush1.msra.mxu0 %v41
  %205 = vmatprep.subr.mxu0 0.0
  %206 = vmatpush1.msra.mxu0 0.0
  %207 = vmatprep.subr.mxu0 0.0
  %208 = vmatpush1.msra.mxu0 0.0
  %209 = vmatprep.subr.mxu0 0.0
  %210 = vmatpush1.msra.mxu0 0.0
  %211 = vmatprep.subr.mxu0 0.0
  %212 = vmatpush1.msra.mxu0 0.0
  %213 = vmatprep.subr.mxu0 0.0
  %214 = vmatpush1.msra.mxu0 0.0
  %215 = vmatprep.subr.mxu0 0.0
  %216 = vmatpush1.msra.mxu0 0.0
  %217 = vmatprep.subr.mxu0 0.0
  %218 = vmatpush1.msra.mxu0 0.0
  %219 = vmatprep.subr.mxu0 0.0
  %220 = vmatpush1.msra.mxu0 0.0
  %221 = vmatprep.subr.mxu0 0.0
  %222 = vmatpush1.msra.mxu0 0.0
  %223 = vmatprep.subr.mxu0 0.0
  %224 = vmatpush1.msra.mxu0 0.0
  %225 = vmatprep.subr.mxu0 0.0
  %226 = vmatpush1.msra.mxu0 0.0
  %227 = vmatprep.subr.mxu0 0.0
  %228 = vmatpush1.msra.mxu0 0.0
  %229 = vmatprep.subr.mxu0 0.0
  %230 = vmatpush1.msra.mxu0 0.0
  %231 = vmatprep.subr.mxu0 0.0
  %232 = vmatpush1.msra.mxu0 0.0
  %233 = vmatprep.subr.mxu0 0.0
  %234 = vmatpush1.msra.mxu0 0.0
  %235 = vmatprep.subr.mxu0 0.0
  %236 = vmatpush1.msra.mxu0 0.0
  %237 = vmatprep.subr.mxu0 0.0
  %238 = vmatpush1.msra.mxu0 0.0
  %239 = vmatprep.subr.mxu0 0.0
  %240 = vmatpush1.msra.mxu0 0.0
  %241 = vmatprep.subr.mxu0 0.0
  %242 = vmatpush1.msra.mxu0 0.0
  %243 = vmatprep.subr.mxu0 0.0
  %244 = vmatpush1.msra.mxu0 0.0
  %245 = vmatprep.subr.mxu0 0.0
  %246 = vmatpush1.msra.mxu0 0.0
  %247 = vmatprep.subr.mxu0 0.0
  %248 = vmatpush1.msra.mxu0 0.0
  %249 = vmatprep.subr.mxu0 0.0
  %250 = vmatpush1.msra.mxu0 0.0
  %251 = vmatprep.subr.mxu0 0.0
  %252 = vmatpush1.msra.mxu0 0.0
  %253 = vmatprep.subr.mxu0 0.0
  %254 = vmatpush1.msra.mxu0 0.0
  %255 = vmatprep.subr.mxu0 0.0
  %256 = vmatpush1.msra.mxu0 0.0
  %257 = vmatprep.subr.mxu0 0.0
  %258 = vmatpush1.msra.mxu0 0.0
  %259 = vmatprep.subr.mxu0 0.0
  %260 = vmatpush1.msra.mxu0 0.0
  %261 = vmatprep.mubr.f32.mxu0 0.0
  %262 = vmatmul.mubr.f32.gmra.mrb[0].mxu0 %v61
  %v263 = vpop.f32.mrb[0].mxu0
  %v264 = vadd.f32 %v55, %v263
  %v265 = vpop.f32.mrb[0].mxu0
  %266 = vmatprep.mubr.f32.mxu0 0.0
  %267 = vmatmul.mubr.f32.gmra.mrb[0].mxu0 %v64
  %v268 = vpop.f32.mrb[0].mxu0
  %v269 = vadd.f32 %v55, %v268
  %v270 = vpop.f32.mrb[0].mxu0
  %271 = vmatprep.mubr.f32.mxu0 0.0
  %272 = vmatmul.mubr.f32.gmra.mrb[0].mxu0 %v67
  %v273 = vpop.f32.mrb[0].mxu0
  %v274 = vadd.f32 %v55, %v273
  %v275 = vpop.f32.mrb[0].mxu0
  %276 = vmatprep.mubr.f32.mxu0 0.0
  %277 = vmatmul.mubr.f32.gmra.mrb[0].mxu0 %v70
  %v278 = vpop.f32.mrb[0].mxu0
  %v279 = vadd.f32 %v55, %v278
  %v280 = vpop.f32.mrb[0].mxu0
  %281 = vmatprep.mubr.f32.mxu0 0.0
  %282 = vmatmul.mubr.f32.gmra.mrb[0].mxu0 %v73
  %v283 = vpop.f32.mrb[0].mxu0
  %v284 = vadd.f32 %v55, %v283
  %v285 = vpop.f32.mrb[0].mxu0
  %286 = vmatprep.mubr.f32.mxu0 0.0
  %287 = vmatmul.mubr.f32.gmra.mrb[0].mxu0 %v76
  %v288 = vpop.f32.mrb[0].mxu0
  %v289 = vadd.f32 %v55, %v288
  %v290 = vpop.f32.mrb[0].mxu0
  %291 = vmatprep.mubr.f32.mxu0 0.0
  %292 = vmatmul.mubr.f32.gmra.mrb[0].mxu0 %v79
  %v293 = vpop.f32.mrb[0].mxu0
  %v294 = vadd.f32 %v55, %v293
  %v295 = vpop.f32.mrb[0].mxu0
  %296 = vmatprep.mubr.f32.mxu0 0.0
  %297 = vmatmul.mubr.f32.gmra.mrb[0].mxu0 %v82
  %v298 = vpop.f32.mrb[0].mxu0
  %v299 = vadd.f32 %v55, %v298
  %v300 = vpop.f32.mrb[0].mxu0
  %301 = vdwg.mxu0
  %302 = vst [vmem:[#allocation2] sm:$0xff] %v151
  %303 = vst [vmem:[#allocation2 + $0x8] sm:$0xff] %v153
  %304 = vst [vmem:[#allocation2 + $0x10] sm:$0xff] %v264
  %305 = vst [vmem:[#allocation2 + $0x18] sm:$0xff] %v157
  %306 = vst [vmem:[#allocation2 + $0x20] sm:$0xff] %v159
  %307 = vst [vmem:[#allocation2 + $0x28] sm:$0xff] %v269
  %308 = vst [vmem:[#allocation2 + $0x30] sm:$0xff] %v163
  %309 = vst [vmem:[#allocation2 + $0x38] sm:$0xff] %v165
  %310 = vst [vmem:[#allocation2 + $0x40] sm:$0xff] %v274
  %311 = vst [vmem:[#allocation2 + $0x48] sm:$0xff] %v169
  %312 = vst [vmem:[#allocation2 + $0x50] sm:$0xff] %v171
  %313 = vst [vmem:[#allocation2 + $0x58] sm:$0xff] %v279
  %314 = vst [vmem:[#allocation2 + $0x60] sm:$0xff] %v175
  %315 = vst [vmem:[#allocation2 + $0x68] sm:$0xff] %v177
  %316 = vst [vmem:[#allocation2 + $0x70] sm:$0xff] %v284
  %317 = vst [vmem:[#allocation2 + $0x78] sm:$0xff] %v181
  %318 = vst [vmem:[#allocation2 + $0x80] sm:$0xff] %v183
  %319 = vst [vmem:[#allocation2 + $0x88] sm:$0xff] %v289
  %320 = vst [vmem:[#allocation2 + $0x90] sm:$0xff] %v187
  %321 = vst [vmem:[#allocation2 + $0x98] sm:$0xff] %v189
  %322 = vst [vmem:[#allocation2 + $0xa0] sm:$0xff] %v294
  %323 = vst [vmem:[#allocation2 + $0xa8] sm:$0xff] %v193
  %324 = vst [vmem:[#allocation2 + $0xb0] sm:$0xff] %v195
  %325 = vst [vmem:[#allocation2 + $0xb8] sm:$0xff] %v299
  %v326 = vld [vmem:[%s2] sm:$0xff]
  %v327 = vld [vmem:[%s2 + $0x8] sm:$0xff]
  %v328 = vld [vmem:[%s2 + $0x10] sm:$0xff]
  %v329 = vld [vmem:[%s2 + $0x18] sm:$0xff]
  %v330 = vld [vmem:[%s2 + $0x20] sm:$0xff]
  %v331 = vld [vmem:[%s2 + $0x28] sm:$0xff]
  %v332 = vld [vmem:[%s2 + $0x30] sm:$0xff]
  %v333 = vld [vmem:[%s2 + $0x38] sm:$0xff]
  %v334 = vld [vmem:[%s2 + $0x40] sm:$0xff]
  %v335 = vld [vmem:[%s2 + $0x48] sm:$0xff]
  %v336 = vld [vmem:[%s2 + $0x50] sm:$0xff]
  %v337 = vld [vmem:[%s2 + $0x58] sm:$0xff]
  %v338 = vld [vmem:[%s2 + $0x60] sm:$0xff]
  %v339 = vld [vmem:[%s2 + $0x68] sm:$0xff]
  %v340 = vld [vmem:[%s2 + $0x70] sm:$0xff]
  %v341 = vld [vmem:[%s2 + $0x78] sm:$0xff]
  %v342 = vld [vmem:[%s2 + $0x80] sm:$0xff]
  %v343 = vld [vmem:[%s2 + $0x88] sm:$0xff]
  %v344 = vld [vmem:[%s2 + $0x90] sm:$0xff]
  %v345 = vld [vmem:[%s2 + $0x98] sm:$0xff]
  %v346 = vld [vmem:[%s2 + $0xa0] sm:$0xff]
  %v347 = vld [vmem:[%s2 + $0xa8] sm:$0xff]
  %v348 = vld [vmem:[%s2 + $0xb0] sm:$0xff]
  %v349 = vld [vmem:[%s2 + $0xb8] sm:$0xff]
  %v350 = vld [vmem:[%s2 + $0xc0] sm:$0xff]
  %v351 = vld [vmem:[%s2 + $0xc8] sm:$0xff]
  %v352 = vld [vmem:[%s2 + $0xd0] sm:$0xff]
  %v353 = vld [vmem:[%s2 + $0xd8] sm:$0xff]
  %v354 = vld [vmem:[%s2 + $0xe0] sm:$0xff]
  %v355 = vld [vmem:[%s2 + $0xe8] sm:$0xff]
  %v356 = vld [vmem:[%s2 + $0xf0] sm:$0xff]
  %v357 = vld [vmem:[%s2 + $0xf8] sm:$0xff]
  %v358 = vld [vmem:[%s2 + $0x100] sm:$0xff]
  %v359 = vld [vmem:[%s2 + $0x108] sm:$0xff]
  %v360 = vld [vmem:[%s2 + $0x110] sm:$0xff]
  %v361 = vld [vmem:[%s2 + $0x118] sm:$0xff]
  %v362 = vld [vmem:[%s2 + $0x120] sm:$0xff]
  %v363 = vld [vmem:[%s2 + $0x128] sm:$0xff]
  %v364 = vld [vmem:[%s2 + $0x130] sm:$0xff]
  %v365 = vld [vmem:[%s2 + $0x138] sm:$0xff]
  %v366 = vld [vmem:[%s2 + $0x140] sm:$0xff]
  %v367 = vld [vmem:[%s2 + $0x148] sm:$0xff]
  %v368 = vld [vmem:[%s2 + $0x150] sm:$0xff]
  %v369 = vld [vmem:[%s2 + $0x158] sm:$0xff]
  %v370 = vld [vmem:[%s2 + $0x160] sm:$0xff]
  %v371 = vld [vmem:[%s2 + $0x168] sm:$0xff]
  %v372 = vld [vmem:[%s2 + $0x170] sm:$0xff]
  %v373 = vld [vmem:[%s2 + $0x178] sm:$0xff]
  %v374 = vld [vmem:[%s4] sm:$0x7]
  %s375 = smul.u32 0, 3
  %s376 = smul.addr %s375, 8
  %s377 = scalar_lea.vmem [#allocation2], %s376
  %v378 = vld [vmem:[%s377] sm:$0xff]
  %v379 = vld [vmem:[%s377 + $0x8] sm:$0xff]
  %v380 = vld [vmem:[%s377 + $0x10] sm:$0xff]
  %v382 = vlaneseq
  %v383 = vshrl.u32 %v382, 7
  %v384 = vsub.s32 0, %v383
  %v385 = vrot.slane %v374, %v384
  %v386 = vlaneseq
  %v387 = vshrl.u32 %v386, 7
  %v388 = vsub.s32 1, %v387
  %v389 = vrot.slane %v374, %v388
  %v390 = vlaneseq
  %v391 = vshrl.u32 %v390, 7
  %v392 = vsub.s32 2, %v391
  %v393 = vrot.slane %v374, %v392
  %397 = vmatprep.subr.mxu0 %v327
  %398 = vmatpush1.msra.mxu0 %v326
  %399 = vmatprep.subr.mxu0 %v330
  %400 = vmatpush1.msra.mxu0 %v329
  %401 = vmatprep.subr.mxu0 %v333
  %402 = vmatpush1.msra.mxu0 %v332
  %403 = vmatprep.subr.mxu0 %v336
  %404 = vmatpush1.msra.mxu0 %v335
  %405 = vmatprep.subr.mxu0 %v339
  %406 = vmatpush1.msra.mxu0 %v338
  %407 = vmatprep.subr.mxu0 %v342
  %408 = vmatpush1.msra.mxu0 %v341
  %409 = vmatprep.subr.mxu0 %v345
  %410 = vmatpush1.msra.mxu0 %v344
  %411 = vmatprep.subr.mxu0 %v348
  %412 = vmatpush1.msra.mxu0 %v347
  %413 = vmatprep.subr.mxu0 %v351
  %414 = vmatpush1.msra.mxu0 %v350
  %415 = vmatprep.subr.mxu0 %v354
  %416 = vmatpush1.msra.mxu0 %v353
  %417 = vmatprep.subr.mxu0 %v357
  %418 = vmatpush1.msra.mxu0 %v356
  %419 = vmatprep.subr.mxu0 %v360
  %420 = vmatpush1.msra.mxu0 %v359
  %421 = vmatprep.subr.mxu0 %v363
  %422 = vmatpush1.msra.mxu0 %v362
  %423 = vmatprep.subr.mxu0 %v366
  %424 = vmatpush1.msra.mxu0 %v365
  %425 = vmatprep.subr.mxu0 %v369
  %426 = vmatpush1.msra.mxu0 %v368
  %427 = vmatprep.subr.mxu0 %v372
  %428 = vmatpush1.msra.mxu0 %v371
  %429 = vmatprep.subr.mxu0 0.0
  %430 = vmatpush1.msra.mxu0 0.0
  %431 = vmatprep.subr.mxu0 0.0
  %432 = vmatpush1.msra.mxu0 0.0
  %433 = vmatprep.subr.mxu0 0.0
  %434 = vmatpush1.msra.mxu0 0.0
  %435 = vmatprep.subr.mxu0 0.0
  %436 = vmatpush1.msra.mxu0 0.0
  %437 = vmatprep.subr.mxu0 0.0
  %438 = vmatpush1.msra.mxu0 0.0
  %439 = vmatprep.subr.mxu0 0.0
  %440 = vmatpush1.msra.mxu0 0.0
  %441 = vmatprep.subr.mxu0 0.0
  %442 = vmatpush1.msra.mxu0 0.0
  %443 = vmatprep.subr.mxu0 0.0
  %444 = vmatpush1.msra.mxu0 0.0
  %445 = vmatprep.subr.mxu0 0.0
  %446 = vmatpush1.msra.mxu0 0.0
  %447 = vmatprep.subr.mxu0 0.0
  %448 = vmatpush1.msra.mxu0 0.0
  %449 = vmatprep.subr.mxu0 0.0
  %450 = vmatpush1.msra.mxu0 0.0
  %451 = vmatprep.subr.mxu0 0.0
  %452 = vmatpush1.msra.mxu0 0.0
  %453 = vmatprep.subr.mxu0 0.0
  %454 = vmatpush1.msra.mxu0 0.0
  %455 = vmatprep.subr.mxu0 0.0
  %456 = vmatpush1.msra.mxu0 0.0
  %457 = vmatprep.subr.mxu0 0.0
  %458 = vmatpush1.msra.mxu0 0.0
  %459 = vmatprep.subr.mxu0 0.0
  %460 = vmatpush1.msra.mxu0 0.0
  %461 = vmatprep.mubr.f32.mxu0 0.0
  %462 = vmatmul.mubr.f32.gmra.mrb[0].mxu0 0.0
  %v463 = vpop.f32.mrb[0].mxu0
  %v464 = vadd.f32 %v385, %v463
  %v465 = vpop.f32.mrb[0].mxu0
  %v466 = vadd.f32 %v389, %v465
  %467 = vdwg.mxu0
  %468 = vmatprep.subr.mxu0 0.0
  %469 = vmatpush1.msra.mxu0 %v328
  %470 = vmatprep.subr.mxu0 0.0
  %471 = vmatpush1.msra.mxu0 %v331
  %472 = vmatprep.subr.mxu0 0.0
  %473 = vmatpush1.msra.mxu0 %v334
  %474 = vmatprep.subr.mxu0 0.0
  %475 = vmatpush1.msra.mxu0 %v337
  %476 = vmatprep.subr.mxu0 0.0
  %477 = vmatpush1.msra.mxu0 %v340
  %478 = vmatprep.subr.mxu0 0.0
  %479 = vmatpush1.msra.mxu0 %v343
  %480 = vmatprep.subr.mxu0 0.0
  %481 = vmatpush1.msra.mxu0 %v346
  %482 = vmatprep.subr.mxu0 0.0
  %483 = vmatpush1.msra.mxu0 %v349
  %484 = vmatprep.subr.mxu0 0.0
  %485 = vmatpush1.msra.mxu0 %v352
  %486 = vmatprep.subr.mxu0 0.0
  %487 = vmatpush1.msra.mxu0 %v355
  %488 = vmatprep.subr.mxu0 0.0
  %489 = vmatpush1.msra.mxu0 %v358
  %490 = vmatprep.subr.mxu0 0.0
  %491 = vmatpush1.msra.mxu0 %v361
  %492 = vmatprep.subr.mxu0 0.0
  %493 = vmatpush1.msra.mxu0 %v364
  %494 = vmatprep.subr.mxu0 0.0
  %495 = vmatpush1.msra.mxu0 %v367
  %496 = vmatprep.subr.mxu0 0.0
  %497 = vmatpush1.msra.mxu0 %v370
  %498 = vmatprep.subr.mxu0 0.0
  %499 = vmatpush1.msra.mxu0 %v373
  %500 = vmatprep.subr.mxu0 0.0
  %501 = vmatpush1.msra.mxu0 0.0
  %502 = vmatprep.subr.mxu0 0.0
  %503 = vmatpush1.msra.mxu0 0.0
  %504 = vmatprep.subr.mxu0 0.0
  %505 = vmatpush1.msra.mxu0 0.0
  %506 = vmatprep.subr.mxu0 0.0
  %507 = vmatpush1.msra.mxu0 0.0
  %508 = vmatprep.subr.mxu0 0.0
  %509 = vmatpush1.msra.mxu0 0.0
  %510 = vmatprep.subr.mxu0 0.0
  %511 = vmatpush1.msra.mxu0 0.0
  %512 = vmatprep.subr.mxu0 0.0
  %513 = vmatpush1.msra.mxu0 0.0
  %514 = vmatprep.subr.mxu0 0.0
  %515 = vmatpush1.msra.mxu0 0.0
  %516 = vmatprep.subr.mxu0 0.0
  %517 = vmatpush1.msra.mxu0 0.0
  %518 = vmatprep.subr.mxu0 0.0
  %519 = vmatpush1.msra.mxu0 0.0
  %520 = vmatprep.subr.mxu0 0.0
  %521 = vmatpush1.msra.mxu0 0.0
  %522 = vmatprep.subr.mxu0 0.0
  %523 = vmatpush1.msra.mxu0 0.0
  %524 = vmatprep.subr.mxu0 0.0
  %525 = vmatpush1.msra.mxu0 0.0
  %526 = vmatprep.subr.mxu0 0.0
  %527 = vmatpush1.msra.mxu0 0.0
  %528 = vmatprep.subr.mxu0 0.0
  %529 = vmatpush1.msra.mxu0 0.0
  %530 = vmatprep.subr.mxu0 0.0
  %531 = vmatpush1.msra.mxu0 0.0
  %532 = vmatprep.mubr.f32.mxu0 0.0
  %533 = vmatmul.mubr.f32.gmra.mrb[0].mxu0 0.0
  %v534 = vpop.f32.mrb[0].mxu0
  %v535 = vadd.f32 %v393, %v534
  %v536 = vpop.f32.mrb[0].mxu0
  %537 = vdwg.mxu0
  %v538 = vadd.f32 %v378, %v464
  %v539 = vxor.u32 %v538, 2147483648
  %v540 = vmul.f32 %v539, 1.442695
  %v541 = vpow.pop %v540
  %v542 = vadd.f32 %v541, 1.0
  %v543 = vrcp.pop %v542
  %v544 = vmul.f32 1.0, %v543
  %v545 = vadd.f32 %v379, %v466
  %v546 = vxor.u32 %v545, 2147483648
  %v547 = vmul.f32 %v546, 1.442695
  %v548 = vpow.pop %v547
  %v549 = vadd.f32 %v548, 1.0
  %v550 = vrcp.pop %v549
  %v551 = vmul.f32 1.0, %v550
  %v552 = vmul.f32 %v544, %v535
  %v553 = vadd.f32 %v380, %v552
  %v554 = vtanh.pop %v553
  %v555 = vsub.f32 1.0, %v551
  %v556 = vmul.f32 %v555, %v554
  %v557 = vmul.f32 %v551, 0.0
  %v558 = vadd.f32 %v556, %v557
  %559 = vst [vmem:[%s5] sm:$0xff] %v558
  %s560 = smul.u32 1, 3
  %s561 = smul.addr %s560, 8
  %s562 = scalar_lea.vmem [#allocation2], %s561
  %v563 = vld [vmem:[%s562] sm:$0xff]
  %v564 = vld [vmem:[%s562 + $0x8] sm:$0xff]
  %v565 = vld [vmem:[%s562 + $0x10] sm:$0xff]
  %566 = vmatprep.subr.mxu0 %v327
  %567 = vmatpush1.msra.mxu0 %v326
  %568 = vmatprep.subr.mxu0 %v330
  %569 = vmatpush1.msra.mxu0 %v329
  %570 = vmatprep.subr.mxu0 %v333
  %571 = vmatpush1.msra.mxu0 %v332
  %572 = vmatprep.subr.mxu0 %v336
  %573 = vmatpush1.msra.mxu0 %v335
  %574 = vmatprep.subr.mxu0 %v339
  %575 = vmatpush1.msra.mxu0 %v338
  %576 = vmatprep.subr.mxu0 %v342
  %577 = vmatpush1.msra.mxu0 %v341
  %578 = vmatprep.subr.mxu0 %v345
  %579 = vmatpush1.msra.mxu0 %v344
  %580 = vmatprep.subr.mxu0 %v348
  %581 = vmatpush1.msra.mxu0 %v347
  %582 = vmatprep.subr.mxu0 %v351
  %583 = vmatpush1.msra.mxu0 %v350
  %584 = vmatprep.subr.mxu0 %v354
  %585 = vmatpush1.msra.mxu0 %v353
  %586 = vmatprep.subr.mxu0 %v357
  %587 = vmatpush1.msra.mxu0 %v356
  %588 = vmatprep.subr.mxu0 %v360
  %589 = vmatpush1.msra.mxu0 %v359
  %590 = vmatprep.subr.mxu0 %v363
  %591 = vmatpush1.msra.mxu0 %v362
  %592 = vmatprep.subr.mxu0 %v366
  %593 = vmatpush1.msra.mxu0 %v365
  %594 = vmatprep.subr.mxu0 %v369
  %595 = vmatpush1.msra.mxu0 %v368
  %596 = vmatprep.subr.mxu0 %v372
  %597 = vmatpush1.msra.mxu0 %v371
  %598 = vmatprep.subr.mxu0 0.0
  %599 = vmatpush1.msra.mxu0 0.0
  %600 = vmatprep.subr.mxu0 0.0
  %601 = vmatpush1.msra.mxu0 0.0
  %602 = vmatprep.subr.mxu0 0.0
  %603 = vmatpush1.msra.mxu0 0.0
  %604 = vmatprep.subr.mxu0 0.0
  %605 = vmatpush1.msra.mxu0 0.0
  %606 = vmatprep.subr.mxu0 0.0
  %607 = vmatpush1.msra.mxu0 0.0
  %608 = vmatprep.subr.mxu0 0.0
  %609 = vmatpush1.msra.mxu0 0.0
  %610 = vmatprep.subr.mxu0 0.0
  %611 = vmatpush1.msra.mxu0 0.0
  %612 = vmatprep.subr.mxu0 0.0
  %613 = vmatpush1.msra.mxu0 0.0
  %614 = vmatprep.subr.mxu0 0.0
  %615 = vmatpush1.msra.mxu0 0.0
  %616 = vmatprep.subr.mxu0 0.0
  %617 = vmatpush1.msra.mxu0 0.0
  %618 = vmatprep.subr.mxu0 0.0
  %619 = vmatpush1.msra.mxu0 0.0
  %620 = vmatprep.subr.mxu0 0.0
  %621 = vmatpush1.msra.mxu0 0.0
  %622 = vmatprep.subr.mxu0 0.0
  %623 = vmatpush1.msra.mxu0 0.0
  %624 = vmatprep.subr.mxu0 0.0
  %625 = vmatpush1.msra.mxu0 0.0
  %626 = vmatprep.subr.mxu0 0.0
  %627 = vmatpush1.msra.mxu0 0.0
  %628 = vmatprep.subr.mxu0 0.0
  %629 = vmatpush1.msra.mxu0 0.0
  %630 = vmatprep.mubr.f32.mxu0 0.0
  %631 = vmatmul.mubr.f32.gmra.mrb[0].mxu0 %v558
  %v632 = vpop.f32.mrb[0].mxu0
  %v633 = vadd.f32 %v385, %v632
  %v634 = vpop.f32.mrb[0].mxu0
  %v635 = vadd.f32 %v389, %v634
  %636 = vdwg.mxu0
  %637 = vmatprep.subr.mxu0 0.0
  %638 = vmatpush1.msra.mxu0 %v328
  %639 = vmatprep.subr.mxu0 0.0
  %640 = vmatpush1.msra.mxu0 %v331
  %641 = vmatprep.subr.mxu0 0.0
  %642 = vmatpush1.msra.mxu0 %v334
  %643 = vmatprep.subr.mxu0 0.0
  %644 = vmatpush1.msra.mxu0 %v337
  %645 = vmatprep.subr.mxu0 0.0
  %646 = vmatpush1.msra.mxu0 %v340
  %647 = vmatprep.subr.mxu0 0.0
  %648 = vmatpush1.msra.mxu0 %v343
  %649 = vmatprep.subr.mxu0 0.0
  %650 = vmatpush1.msra.mxu0 %v346
  %651 = vmatprep.subr.mxu0 0.0
  %652 = vmatpush1.msra.mxu0 %v349
  %653 = vmatprep.subr.mxu0 0.0
  %654 = vmatpush1.msra.mxu0 %v352
  %655 = vmatprep.subr.mxu0 0.0
  %656 = vmatpush1.msra.mxu0 %v355
  %657 = vmatprep.subr.mxu0 0.0
  %658 = vmatpush1.msra.mxu0 %v358
  %659 = vmatprep.subr.mxu0 0.0
  %660 = vmatpush1.msra.mxu0 %v361
  %661 = vmatprep.subr.mxu0 0.0
  %662 = vmatpush1.msra.mxu0 %v364
  %663 = vmatprep.subr.mxu0 0.0
  %664 = vmatpush1.msra.mxu0 %v367
  %665 = vmatprep.subr.mxu0 0.0
  %666 = vmatpush1.msra.mxu0 %v370
  %667 = vmatprep.subr.mxu0 0.0
  %668 = vmatpush1.msra.mxu0 %v373
  %669 = vmatprep.subr.mxu0 0.0
  %670 = vmatpush1.msra.mxu0 0.0
  %671 = vmatprep.subr.mxu0 0.0
  %672 = vmatpush1.msra.mxu0 0.0
  %673 = vmatprep.subr.mxu0 0.0
  %674 = vmatpush1.msra.mxu0 0.0
  %675 = vmatprep.subr.mxu0 0.0
  %676 = vmatpush1.msra.mxu0 0.0
  %677 = vmatprep.subr.mxu0 0.0
  %678 = vmatpush1.msra.mxu0 0.0
  %679 = vmatprep.subr.mxu0 0.0
  %680 = vmatpush1.msra.mxu0 0.0
  %681 = vmatprep.subr.mxu0 0.0
  %682 = vmatpush1.msra.mxu0 0.0
  %683 = vmatprep.subr.mxu0 0.0
  %684 = vmatpush1.msra.mxu0 0.0
  %685 = vmatprep.subr.mxu0 0.0
  %686 = vmatpush1.msra.mxu0 0.0
  %687 = vmatprep.subr.mxu0 0.0
  %688 = vmatpush1.msra.mxu0 0.0
  %689 = vmatprep.subr.mxu0 0.0
  %690 = vmatpush1.msra.mxu0 0.0
  %691 = vmatprep.subr.mxu0 0.0
  %692 = vmatpush1.msra.mxu0 0.0
  %693 = vmatprep.subr.mxu0 0.0
  %694 = vmatpush1.msra.mxu0 0.0
  %695 = vmatprep.subr.mxu0 0.0
  %696 = vmatpush1.msra.mxu0 0.0
  %697 = vmatprep.subr.mxu0 0.0
  %698 = vmatpush1.msra.mxu0 0.0
  %699 = vmatprep.subr.mxu0 0.0
  %700 = vmatpush1.msra.mxu0 0.0
  %701 = vmatprep.mubr.f32.mxu0 0.0
  %702 = vmatmul.mubr.f32.gmra.mrb[0].mxu0 %v558
  %v703 = vpop.f32.mrb[0].mxu0
  %v704 = vadd.f32 %v393, %v703
  %v705 = vpop.f32.mrb[0].mxu0
  %706 = vdwg.mxu0
  %v707 = vadd.f32 %v563, %v633
  %v708 = vxor.u32 %v707, 2147483648
  %v709 = vmul.f32 %v708, 1.442695
  %v710 = vpow.pop %v709
  %v711 = vadd.f32 %v710, 1.0
  %v712 = vrcp.pop %v711
  %v713 = vmul.f32 1.0, %v712
  %v714 = vadd.f32 %v564, %v635
  %v715 = vxor.u32 %v714, 2147483648
  %v716 = vmul.f32 %v715, 1.442695
  %v717 = vpow.pop %v716
  %v718 = vadd.f32 %v717, 1.0
  %v719 = vrcp.pop %v718
  %v720 = vmul.f32 1.0, %v719
  %v721 = vmul.f32 %v713, %v704
  %v722 = vadd.f32 %v565, %v721
  %v723 = vtanh.pop %v722
  %v724 = vsub.f32 1.0, %v720
  %v725 = vmul.f32 %v724, %v723
  %v726 = vmul.f32 %v720, %v558
  %v727 = vadd.f32 %v725, %v726
  %s728 = scalar_lea.vmem %s5, 8
  %729 = vst [vmem:[%s728] sm:$0xff] %v727
  %s730 = smul.u32 2, 3
  %s731 = smul.addr %s730, 8
  %s732 = scalar_lea.vmem [#allocation2], %s731
  %v733 = vld [vmem:[%s732] sm:$0xff]
  %v734 = vld [vmem:[%s732 + $0x8] sm:$0xff]
  %v735 = vld [vmem:[%s732 + $0x10] sm:$0xff]
  %736 = vmatprep.subr.mxu0 %v327
  %737 = vmatpush1.msra.mxu0 %v326
  %738 = vmatprep.subr.mxu0 %v330
  %739 = vmatpush1.msra.mxu0 %v329
  %740 = vmatprep.subr.mxu0 %v333
  %741 = vmatpush1.msra.mxu0 %v332
  %742 = vmatprep.subr.mxu0 %v336
  %743 = vmatpush1.msra.mxu0 %v335
  %744 = vmatprep.subr.mxu0 %v339
  %745 = vmatpush1.msra.mxu0 %v338
  %746 = vmatprep.subr.mxu0 %v342
  %747 = vmatpush1.msra.mxu0 %v341
  %748 = vmatprep.subr.mxu0 %v345
  %749 = vmatpush1.msra.mxu0 %v344
  %750 = vmatprep.subr.mxu0 %v348
  %751 = vmatpush1.msra.mxu0 %v347
  %752 = vmatprep.subr.mxu0 %v351
  %753 = vmatpush1.msra.mxu0 %v350
  %754 = vmatprep.subr.mxu0 %v354
  %755 = vmatpush1.msra.mxu0 %v353
  %756 = vmatprep.subr.mxu0 %v357
  %757 = vmatpush1.msra.mxu0 %v356
  %758 = vmatprep.subr.mxu0 %v360
  %759 = vmatpush1.msra.mxu0 %v359
  %760 = vmatprep.subr.mxu0 %v363
  %761 = vmatpush1.msra.mxu0 %v362
  %762 = vmatprep.subr.mxu0 %v366
  %763 = vmatpush1.msra.mxu0 %v365
  %764 = vmatprep.subr.mxu0 %v369
  %765 = vmatpush1.msra.mxu0 %v368
  %766 = vmatprep.subr.mxu0 %v372
  %767 = vmatpush1.msra.mxu0 %v371
  %768 = vmatprep.subr.mxu0 0.0
  %769 = vmatpush1.msra.mxu0 0.0
  %770 = vmatprep.subr.mxu0 0.0
  %771 = vmatpush1.msra.mxu0 0.0
  %772 = vmatprep.subr.mxu0 0.0
  %773 = vmatpush1.msra.mxu0 0.0
  %774 = vmatprep.subr.mxu0 0.0
  %775 = vmatpush1.msra.mxu0 0.0
  %776 = vmatprep.subr.mxu0 0.0
  %777 = vmatpush1.msra.mxu0 0.0
  %778 = vmatprep.subr.mxu0 0.0
  %779 = vmatpush1.msra.mxu0 0.0
  %780 = vmatprep.subr.mxu0 0.0
  %781 = vmatpush1.msra.mxu0 0.0
  %782 = vmatprep.subr.mxu0 0.0
  %783 = vmatpush1.msra.mxu0 0.0
  %784 = vmatprep.subr.mxu0 0.0
  %785 = vmatpush1.msra.mxu0 0.0
  %786 = vmatprep.subr.mxu0 0.0
  %787 = vmatpush1.msra.mxu0 0.0
  %788 = vmatprep.subr.mxu0 0.0
  %789 = vmatpush1.msra.mxu0 0.0
  %790 = vmatprep.subr.mxu0 0.0
  %791 = vmatpush1.msra.mxu0 0.0
  %792 = vmatprep.subr.mxu0 0.0
  %793 = vmatpush1.msra.mxu0 0.0
  %794 = vmatprep.subr.mxu0 0.0
  %795 = vmatpush1.msra.mxu0 0.0
  %796 = vmatprep.subr.mxu0 0.0
  %797 = vmatpush1.msra.mxu0 0.0
  %798 = vmatprep.subr.mxu0 0.0
  %799 = vmatpush1.msra.mxu0 0.0
  %800 = vmatprep.mubr.f32.mxu0 0.0
  %801 = vmatmul.mubr.f32.gmra.mrb[0].mxu0 %v727
  %v802 = vpop.f32.mrb[0].mxu0
  %v803 = vadd.f32 %v385, %v802
  %v804 = vpop.f32.mrb[0].mxu0
  %v805 = vadd.f32 %v389, %v804
  %806 = vdwg.mxu0
  %807 = vmatprep.subr.mxu0 0.0
  %808 = vmatpush1.msra.mxu0 %v328
  %809 = vmatprep.subr.mxu0 0.0
  %810 = vmatpush1.msra.mxu0 %v331
  %811 = vmatprep.subr.mxu0 0.0
  %812 = vmatpush1.msra.mxu0 %v334
  %813 = vmatprep.subr.mxu0 0.0
  %814 = vmatpush1.msra.mxu0 %v337
  %815 = vmatprep.subr.mxu0 0.0
  %816 = vmatpush1.msra.mxu0 %v340
  %817 = vmatprep.subr.mxu0 0.0
  %818 = vmatpush1.msra.mxu0 %v343
  %819 = vmatprep.subr.mxu0 0.0
  %820 = vmatpush1.msra.mxu0 %v346
  %821 = vmatprep.subr.mxu0 0.0
  %822 = vmatpush1.msra.mxu0 %v349
  %823 = vmatprep.subr.mxu0 0.0
  %824 = vmatpush1.msra.mxu0 %v352
  %825 = vmatprep.subr.mxu0 0.0
  %826 = vmatpush1.msra.mxu0 %v355
  %827 = vmatprep.subr.mxu0 0.0
  %828 = vmatpush1.msra.mxu0 %v358
  %829 = vmatprep.subr.mxu0 0.0
  %830 = vmatpush1.msra.mxu0 %v361
  %831 = vmatprep.subr.mxu0 0.0
  %832 = vmatpush1.msra.mxu0 %v364
  %833 = vmatprep.subr.mxu0 0.0
  %834 = vmatpush1.msra.mxu0 %v367
  %835 = vmatprep.subr.mxu0 0.0
  %836 = vmatpush1.msra.mxu0 %v370
  %837 = vmatprep.subr.mxu0 0.0
  %838 = vmatpush1.msra.mxu0 %v373
  %839 = vmatprep.subr.mxu0 0.0
  %840 = vmatpush1.msra.mxu0 0.0
  %841 = vmatprep.subr.mxu0 0.0
  %842 = vmatpush1.msra.mxu0 0.0
  %843 = vmatprep.subr.mxu0 0.0
  %844 = vmatpush1.msra.mxu0 0.0
  %845 = vmatprep.subr.mxu0 0.0
  %846 = vmatpush1.msra.mxu0 0.0
  %847 = vmatprep.subr.mxu0 0.0
  %848 = vmatpush1.msra.mxu0 0.0
  %849 = vmatprep.subr.mxu0 0.0
  %850 = vmatpush1.msra.mxu0 0.0
  %851 = vmatprep.subr.mxu0 0.0
  %852 = vmatpush1.msra.mxu0 0.0
  %853 = vmatprep.subr.mxu0 0.0
  %854 = vmatpush1.msra.mxu0 0.0
  %855 = vmatprep.subr.mxu0 0.0
  %856 = vmatpush1.msra.mxu0 0.0
  %857 = vmatprep.subr.mxu0 0.0
  %858 = vmatpush1.msra.mxu0 0.0
  %859 = vmatprep.subr.mxu0 0.0
  %860 = vmatpush1.msra.mxu0 0.0
  %861 = vmatprep.subr.mxu0 0.0
  %862 = vmatpush1.msra.mxu0 0.0
  %863 = vmatprep.subr.mxu0 0.0
  %864 = vmatpush1.msra.mxu0 0.0
  %865 = vmatprep.subr.mxu0 0.0
  %866 = vmatpush1.msra.mxu0 0.0
  %867 = vmatprep.subr.mxu0 0.0
  %868 = vmatpush1.msra.mxu0 0.0
  %869 = vmatprep.subr.mxu0 0.0
  %870 = vmatpush1.msra.mxu0 0.0
  %871 = vmatprep.mubr.f32.mxu0 0.0
  %872 = vmatmul.mubr.f32.gmra.mrb[0].mxu0 %v727
  %v873 = vpop.f32.mrb[0].mxu0
  %v874 = vadd.f32 %v393, %v873
  %v875 = vpop.f32.mrb[0].mxu0
  %876 = vdwg.mxu0
  %v877 = vadd.f32 %v733, %v803
  %v878 = vxor.u32 %v877, 2147483648
  %v879 = vmul.f32 %v878, 1.442695
  %v880 = vpow.pop %v879
  %v881 = vadd.f32 %v880, 1.0
  %v882 = vrcp.pop %v881
  %v883 = vmul.f32 1.0, %v882
  %v884 = vadd.f32 %v734, %v805
  %v885 = vxor.u32 %v884, 2147483648
  %v886 = vmul.f32 %v885, 1.442695
  %v887 = vpow.pop %v886
  %v888 = vadd.f32 %v887, 1.0
  %v889 = vrcp.pop %v888
  %v890 = vmul.f32 1.0, %v889
  %v891 = vmul.f32 %v883, %v874
  %v892 = vadd.f32 %v735, %v891
  %v893 = vtanh.pop %v892
  %v894 = vsub.f32 1.0, %v890
  %v895 = vmul.f32 %v894, %v893
  %v896 = vmul.f32 %v890, %v727
  %v897 = vadd.f32 %v895, %v896
  %s898 = scalar_lea.vmem %s5, 16
  %899 = vst [vmem:[%s898] sm:$0xff] %v897
  %s900 = smul.u32 3, 3
  %s901 = smul.addr %s900, 8
  %s902 = scalar_lea.vmem [#allocation2], %s901
  %v903 = vld [vmem:[%s902] sm:$0xff]
  %v904 = vld [vmem:[%s902 + $0x8] sm:$0xff]
  %v905 = vld [vmem:[%s902 + $0x10] sm:$0xff]
  %906 = vmatprep.subr.mxu0 %v327
  %907 = vmatpush1.msra.mxu0 %v326
  %908 = vmatprep.subr.mxu0 %v330
  %909 = vmatpush1.msra.mxu0 %v329
  %910 = vmatprep.subr.mxu0 %v333
  %911 = vmatpush1.msra.mxu0 %v332
  %912 = vmatprep.subr.mxu0 %v336
  %913 = vmatpush1.msra.mxu0 %v335
  %914 = vmatprep.subr.mxu0 %v339
  %915 = vmatpush1.msra.mxu0 %v338
  %916 = vmatprep.subr.mxu0 %v342
  %917 = vmatpush1.msra.mxu0 %v341
  %918 = vmatprep.subr.mxu0 %v345
  %919 = vmatpush1.msra.mxu0 %v344
  %920 = vmatprep.subr.mxu0 %v348
  %921 = vmatpush1.msra.mxu0 %v347
  %922 = vmatprep.subr.mxu0 %v351
  %923 = vmatpush1.msra.mxu0 %v350
  %924 = vmatprep.subr.mxu0 %v354
  %925 = vmatpush1.msra.mxu0 %v353
  %926 = vmatprep.subr.mxu0 %v357
  %927 = vmatpush1.msra.mxu0 %v356
  %928 = vmatprep.subr.mxu0 %v360
  %929 = vmatpush1.msra.mxu0 %v359
  %930 = vmatprep.subr.mxu0 %v363
  %931 = vmatpush1.msra.mxu0 %v362
  %932 = vmatprep.subr.mxu0 %v366
  %933 = vmatpush1.msra.mxu0 %v365
  %934 = vmatprep.subr.mxu0 %v369
  %935 = vmatpush1.msra.mxu0 %v368
  %936 = vmatprep.subr.mxu0 %v372
  %937 = vmatpush1.msra.mxu0 %v371
  %938 = vmatprep.subr.mxu0 0.0
  %939 = vmatpush1.msra.mxu0 0.0
  %940 = vmatprep.subr.mxu0 0.0
  %941 = vmatpush1.msra.mxu0 0.0
  %942 = vmatprep.subr.mxu0 0.0
  %943 = vmatpush1.msra.mxu0 0.0
  %944 = vmatprep.subr.mxu0 0.0
  %945 = vmatpush1.msra.mxu0 0.0
  %946 = vmatprep.subr.mxu0 0.0
  %947 = vmatpush1.msra.mxu0 0.0
  %948 = vmatprep.subr.mxu0 0.0
  %949 = vmatpush1.msra.mxu0 0.0
  %950 = vmatprep.subr.mxu0 0.0
  %951 = vmatpush1.msra.mxu0 0.0
  %952 = vmatprep.subr.mxu0 0.0
  %953 = vmatpush1.msra.mxu0 0.0
  %954 = vmatprep.subr.mxu0 0.0
  %955 = vmatpush1.msra.mxu0 0.0
  %956 = vmatprep.subr.mxu0 0.0
  %957 = vmatpush1.msra.mxu0 0.0
  %958 = vmatprep.subr.mxu0 0.0
  %959 = vmatpush1.msra.mxu0 0.0
  %960 = vmatprep.subr.mxu0 0.0
  %961 = vmatpush1.msra.mxu0 0.0
  %962 = vmatprep.subr.mxu0 0.0
  %963 = vmatpush1.msra.mxu0 0.0
  %964 = vmatprep.subr.mxu0 0.0
  %965 = vmatpush1.msra.mxu0 0.0
  %966 = vmatprep.subr.mxu0 0.0
  %967 = vmatpush1.msra.mxu0 0.0
  %968 = vmatprep.subr.mxu0 0.0
  %969 = vmatpush1.msra.mxu0 0.0
  %970 = vmatprep.mubr.f32.mxu0 0.0
  %971 = vmatmul.mubr.f32.gmra.mrb[0].mxu0 %v897
  %v972 = vpop.f32.mrb[0].mxu0
  %v973 = vadd.f32 %v385, %v972
  %v974 = vpop.f32.mrb[0].mxu0
  %v975 = vadd.f32 %v389, %v974
  %976 = vdwg.mxu0
  %977 = vmatprep.subr.mxu0 0.0
  %978 = vmatpush1.msra.mxu0 %v328
  %979 = vmatprep.subr.mxu0 0.0
  %980 = vmatpush1.msra.mxu0 %v331
  %981 = vmatprep.subr.mxu0 0.0
  %982 = vmatpush1.msra.mxu0 %v334
  %983 = vmatprep.subr.mxu0 0.0
  %984 = vmatpush1.msra.mxu0 %v337
  %985 = vmatprep.subr.mxu0 0.0
  %986 = vmatpush1.msra.mxu0 %v340
  %987 = vmatprep.subr.mxu0 0.0
  %988 = vmatpush1.msra.mxu0 %v343
  %989 = vmatprep.subr.mxu0 0.0
  %990 = vmatpush1.msra.mxu0 %v346
  %991 = vmatprep.subr.mxu0 0.0
  %992 = vmatpush1.msra.mxu0 %v349
  %993 = vmatprep.subr.mxu0 0.0
  %994 = vmatpush1.msra.mxu0 %v352
  %995 = vmatprep.subr.mxu0 0.0
  %996 = vmatpush1.msra.mxu0 %v355
  %997 = vmatprep.subr.mxu0 0.0
  %998 = vmatpush1.msra.mxu0 %v358
  %999 = vmatprep.subr.mxu0 0.0
  %1000 = vmatpush1.msra.mxu0 %v361
  %1001 = vmatprep.subr.mxu0 0.0
  %1002 = vmatpush1.msra.mxu0 %v364
  %1003 = vmatprep.subr.mxu0 0.0
  %1004 = vmatpush1.msra.mxu0 %v367
  %1005 = vmatprep.subr.mxu0 0.0
  %1006 = vmatpush1.msra.mxu0 %v370
  %1007 = vmatprep.subr.mxu0 0.0
  %1008 = vmatpush1.msra.mxu0 %v373
  %1009 = vmatprep.subr.mxu0 0.0
  %1010 = vmatpush1.msra.mxu0 0.0
  %1011 = vmatprep.subr.mxu0 0.0
  %1012 = vmatpush1.msra.mxu0 0.0
  %1013 = vmatprep.subr.mxu0 0.0
  %1014 = vmatpush1.msra.mxu0 0.0
  %1015 = vmatprep.subr.mxu0 0.0
  %1016 = vmatpush1.msra.mxu0 0.0
  %1017 = vmatprep.subr.mxu0 0.0
  %1018 = vmatpush1.msra.mxu0 0.0
  %1019 = vmatprep.subr.mxu0 0.0
  %1020 = vmatpush1.msra.mxu0 0.0
  %1021 = vmatprep.subr.mxu0 0.0
  %1022 = vmatpush1.msra.mxu0 0.0
  %1023 = vmatprep.subr.mxu0 0.0
  %1024 = vmatpush1.msra.mxu0 0.0
  %1025 = vmatprep.subr.mxu0 0.0
  %1026 = vmatpush1.msra.mxu0 0.0
  %1027 = vmatprep.subr.mxu0 0.0
  %1028 = vmatpush1.msra.mxu0 0.0
  %1029 = vmatprep.subr.mxu0 0.0
  %1030 = vmatpush1.msra.mxu0 0.0
  %1031 = vmatprep.subr.mxu0 0.0
  %1032 = vmatpush1.msra.mxu0 0.0
  %1033 = vmatprep.subr.mxu0 0.0
  %1034 = vmatpush1.msra.mxu0 0.0
  %1035 = vmatprep.subr.mxu0 0.0
  %1036 = vmatpush1.msra.mxu0 0.0
  %1037 = vmatprep.subr.mxu0 0.0
  %1038 = vmatpush1.msra.mxu0 0.0
  %1039 = vmatprep.subr.mxu0 0.0
  %1040 = vmatpush1.msra.mxu0 0.0
  %1041 = vmatprep.mubr.f32.mxu0 0.0
  %1042 = vmatmul.mubr.f32.gmra.mrb[0].mxu0 %v897
  %v1043 = vpop.f32.mrb[0].mxu0
  %v1044 = vadd.f32 %v393, %v1043
  %v1045 = vpop.f32.mrb[0].mxu0
  %1046 = vdwg.mxu0
  %v1047 = vadd.f32 %v903, %v973
  %v1048 = vxor.u32 %v1047, 2147483648
  %v1049 = vmul.f32 %v1048, 1.442695
  %v1050 = vpow.pop %v1049
  %v1051 = vadd.f32 %v1050, 1.0
  %v1052 = vrcp.pop %v1051
  %v1053 = vmul.f32 1.0, %v1052
  %v1054 = vadd.f32 %v904, %v975
  %v1055 = vxor.u32 %v1054, 2147483648
  %v1056 = vmul.f32 %v1055, 1.442695
  %v1057 = vpow.pop %v1056
  %v1058 = vadd.f32 %v1057, 1.0
  %v1059 = vrcp.pop %v1058
  %v1060 = vmul.f32 1.0, %v1059
  %v1061 = vmul.f32 %v1053, %v1044
  %v1062 = vadd.f32 %v905, %v1061
  %v1063 = vtanh.pop %v1062
  %v1064 = vsub.f32 1.0, %v1060
  %v1065 = vmul.f32 %v1064, %v1063
  %v1066 = vmul.f32 %v1060, %v897
  %v1067 = vadd.f32 %v1065, %v1066
  %s1068 = scalar_lea.vmem %s5, 24
  %1069 = vst [vmem:[%s1068] sm:$0xff] %v1067
  %s1070 = smul.u32 4, 3
  %s1071 = smul.addr %s1070, 8
  %s1072 = scalar_lea.vmem [#allocation2], %s1071
  %v1073 = vld [vmem:[%s1072] sm:$0xff]
  %v1074 = vld [vmem:[%s1072 + $0x8] sm:$0xff]
  %v1075 = vld [vmem:[%s1072 + $0x10] sm:$0xff]
  %1076 = vmatprep.subr.mxu0 %v327
  %1077 = vmatpush1.msra.mxu0 %v326
  %1078 = vmatprep.subr.mxu0 %v330
  %1079 = vmatpush1.msra.mxu0 %v329
  %1080 = vmatprep.subr.mxu0 %v333
  %1081 = vmatpush1.msra.mxu0 %v332
  %1082 = vmatprep.subr.mxu0 %v336
  %1083 = vmatpush1.msra.mxu0 %v335
  %1084 = vmatprep.subr.mxu0 %v339
  %1085 = vmatpush1.msra.mxu0 %v338
  %1086 = vmatprep.subr.mxu0 %v342
  %1087 = vmatpush1.msra.mxu0 %v341
  %1088 = vmatprep.subr.mxu0 %v345
  %1089 = vmatpush1.msra.mxu0 %v344
  %1090 = vmatprep.subr.mxu0 %v348
  %1091 = vmatpush1.msra.mxu0 %v347
  %1092 = vmatprep.subr.mxu0 %v351
  %1093 = vmatpush1.msra.mxu0 %v350
  %1094 = vmatprep.subr.mxu0 %v354
  %1095 = vmatpush1.msra.mxu0 %v353
  %1096 = vmatprep.subr.mxu0 %v357
  %1097 = vmatpush1.msra.mxu0 %v356
  %1098 = vmatprep.subr.mxu0 %v360
  %1099 = vmatpush1.msra.mxu0 %v359
  %1100 = vmatprep.subr.mxu0 %v363
  %1101 = vmatpush1.msra.mxu0 %v362
  %1102 = vmatprep.subr.mxu0 %v366
  %1103 = vmatpush1.msra.mxu0 %v365
  %1104 = vmatprep.subr.mxu0 %v369
  %1105 = vmatpush1.msra.mxu0 %v368
  %1106 = vmatprep.subr.mxu0 %v372
  %1107 = vmatpush1.msra.mxu0 %v371
  %1108 = vmatprep.subr.mxu0 0.0
  %1109 = vmatpush1.msra.mxu0 0.0
  %1110 = vmatprep.subr.mxu0 0.0
  %1111 = vmatpush1.msra.mxu0 0.0
  %1112 = vmatprep.subr.mxu0 0.0
  %1113 = vmatpush1.msra.mxu0 0.0
  %1114 = vmatprep.subr.mxu0 0.0
  %1115 = vmatpush1.msra.mxu0 0.0
  %1116 = vmatprep.subr.mxu0 0.0
  %1117 = vmatpush1.msra.mxu0 0.0
  %1118 = vmatprep.subr.mxu0 0.0
  %1119 = vmatpush1.msra.mxu0 0.0
  %1120 = vmatprep.subr.mxu0 0.0
  %1121 = vmatpush1.msra.mxu0 0.0
  %1122 = vmatprep.subr.mxu0 0.0
  %1123 = vmatpush1.msra.mxu0 0.0
  %1124 = vmatprep.subr.mxu0 0.0
  %1125 = vmatpush1.msra.mxu0 0.0
  %1126 = vmatprep.subr.mxu0 0.0
  %1127 = vmatpush1.msra.mxu0 0.0
  %1128 = vmatprep.subr.mxu0 0.0
  %1129 = vmatpush1.msra.mxu0 0.0
  %1130 = vmatprep.subr.mxu0 0.0
  %1131 = vmatpush1.msra.mxu0 0.0
  %1132 = vmatprep.subr.mxu0 0.0
  %1133 = vmatpush1.msra.mxu0 0.0
  %1134 = vmatprep.subr.mxu0 0.0
  %1135 = vmatpush1.msra.mxu0 0.0
  %1136 = vmatprep.subr.mxu0 0.0
  %1137 = vmatpush1.msra.mxu0 0.0
  %1138 = vmatprep.subr.mxu0 0.0
  %1139 = vmatpush1.msra.mxu0 0.0
  %1140 = vmatprep.mubr.f32.mxu0 0.0
  %1141 = vmatmul.mubr.f32.gmra.mrb[0].mxu0 %v1067
  %v1142 = vpop.f32.mrb[0].mxu0
  %v1143 = vadd.f32 %v385, %v1142
  %v1144 = vpop.f32.mrb[0].mxu0
  %v1145 = vadd.f32 %v389, %v1144
  %1146 = vdwg.mxu0
  %1147 = vmatprep.subr.mxu0 0.0
  %1148 = vmatpush1.msra.mxu0 %v328
  %1149 = vmatprep.subr.mxu0 0.0
  %1150 = vmatpush1.msra.mxu0 %v331
  %1151 = vmatprep.subr.mxu0 0.0
  %1152 = vmatpush1.msra.mxu0 %v334
  %1153 = vmatprep.subr.mxu0 0.0
  %1154 = vmatpush1.msra.mxu0 %v337
  %1155 = vmatprep.subr.mxu0 0.0
  %1156 = vmatpush1.msra.mxu0 %v340
  %1157 = vmatprep.subr.mxu0 0.0
  %1158 = vmatpush1.msra.mxu0 %v343
  %1159 = vmatprep.subr.mxu0 0.0
  %1160 = vmatpush1.msra.mxu0 %v346
  %1161 = vmatprep.subr.mxu0 0.0
  %1162 = vmatpush1.msra.mxu0 %v349
  %1163 = vmatprep.subr.mxu0 0.0
  %1164 = vmatpush1.msra.mxu0 %v352
  %1165 = vmatprep.subr.mxu0 0.0
  %1166 = vmatpush1.msra.mxu0 %v355
  %1167 = vmatprep.subr.mxu0 0.0
  %1168 = vmatpush1.msra.mxu0 %v358
  %1169 = vmatprep.subr.mxu0 0.0
  %1170 = vmatpush1.msra.mxu0 %v361
  %1171 = vmatprep.subr.mxu0 0.0
  %1172 = vmatpush1.msra.mxu0 %v364
  %1173 = vmatprep.subr.mxu0 0.0
  %1174 = vmatpush1.msra.mxu0 %v367
  %1175 = vmatprep.subr.mxu0 0.0
  %1176 = vmatpush1.msra.mxu0 %v370
  %1177 = vmatprep.subr.mxu0 0.0
  %1178 = vmatpush1.msra.mxu0 %v373
  %1179 = vmatprep.subr.mxu0 0.0
  %1180 = vmatpush1.msra.mxu0 0.0
  %1181 = vmatprep.subr.mxu0 0.0
  %1182 = vmatpush1.msra.mxu0 0.0
  %1183 = vmatprep.subr.mxu0 0.0
  %1184 = vmatpush1.msra.mxu0 0.0
  %1185 = vmatprep.subr.mxu0 0.0
  %1186 = vmatpush1.msra.mxu0 0.0
  %1187 = vmatprep.subr.mxu0 0.0
  %1188 = vmatpush1.msra.mxu0 0.0
  %1189 = vmatprep.subr.mxu0 0.0
  %1190 = vmatpush1.msra.mxu0 0.0
  %1191 = vmatprep.subr.mxu0 0.0
  %1192 = vmatpush1.msra.mxu0 0.0
  %1193 = vmatprep.subr.mxu0 0.0
  %1194 = vmatpush1.msra.mxu0 0.0
  %1195 = vmatprep.subr.mxu0 0.0
  %1196 = vmatpush1.msra.mxu0 0.0
  %1197 = vmatprep.subr.mxu0 0.0
  %1198 = vmatpush1.msra.mxu0 0.0
  %1199 = vmatprep.subr.mxu0 0.0
  %1200 = vmatpush1.msra.mxu0 0.0
  %1201 = vmatprep.subr.mxu0 0.0
  %1202 = vmatpush1.msra.mxu0 0.0
  %1203 = vmatprep.subr.mxu0 0.0
  %1204 = vmatpush1.msra.mxu0 0.0
  %1205 = vmatprep.subr.mxu0 0.0
  %1206 = vmatpush1.msra.mxu0 0.0
  %1207 = vmatprep.subr.mxu0 0.0
  %1208 = vmatpush1.msra.mxu0 0.0
  %1209 = vmatprep.subr.mxu0 0.0
  %1210 = vmatpush1.msra.mxu0 0.0
  %1211 = vmatprep.mubr.f32.mxu0 0.0
  %1212 = vmatmul.mubr.f32.gmra.mrb[0].mxu0 %v1067
  %v1213 = vpop.f32.mrb[0].mxu0
  %v1214 = vadd.f32 %v393, %v1213
  %v1215 = vpop.f32.mrb[0].mxu0
  %1216 = vdwg.mxu0
  %v1217 = vadd.f32 %v1073, %v1143
  %v1218 = vxor.u32 %v1217, 2147483648
  %v1219 = vmul.f32 %v1218, 1.442695
  %v1220 = vpow.pop %v1219
  %v1221 = vadd.f32 %v1220, 1.0
  %v1222 = vrcp.pop %v1221
  %v1223 = vmul.f32 1.0, %v1222
  %v1224 = vadd.f32 %v1074, %v1145
  %v1225 = vxor.u32 %v1224, 2147483648
  %v1226 = vmul.f32 %v1225, 1.442695
  %v1227 = vpow.pop %v1226
  %v1228 = vadd.f32 %v1227, 1.0
  %v1229 = vrcp.pop %v1228
  %v1230 = vmul.f32 1.0, %v1229
  %v1231 = vmul.f32 %v1223, %v1214
  %v1232 = vadd.f32 %v1075, %v1231
  %v1233 = vtanh.pop %v1232
  %v1234 = vsub.f32 1.0, %v1230
  %v1235 = vmul.f32 %v1234, %v1233
  %v1236 = vmul.f32 %v1230, %v1067
  %v1237 = vadd.f32 %v1235, %v1236
  %s1238 = scalar_lea.vmem %s5, 32
  %1239 = vst [vmem:[%s1238] sm:$0xff] %v1237
  %s1240 = smul.u32 5, 3
  %s1241 = smul.addr %s1240, 8
  %s1242 = scalar_lea.vmem [#allocation2], %s1241
  %v1243 = vld [vmem:[%s1242] sm:$0xff]
  %v1244 = vld [vmem:[%s1242 + $0x8] sm:$0xff]
  %v1245 = vld [vmem:[%s1242 + $0x10] sm:$0xff]
  %1246 = vmatprep.subr.mxu0 %v327
  %1247 = vmatpush1.msra.mxu0 %v326
  %1248 = vmatprep.subr.mxu0 %v330
  %1249 = vmatpush1.msra.mxu0 %v329
  %1250 = vmatprep.subr.mxu0 %v333
  %1251 = vmatpush1.msra.mxu0 %v332
  %1252 = vmatprep.subr.mxu0 %v336
  %1253 = vmatpush1.msra.mxu0 %v335
  %1254 = vmatprep.subr.mxu0 %v339
  %1255 = vmatpush1.msra.mxu0 %v338
  %1256 = vmatprep.subr.mxu0 %v342
  %1257 = vmatpush1.msra.mxu0 %v341
  %1258 = vmatprep.subr.mxu0 %v345
  %1259 = vmatpush1.msra.mxu0 %v344
  %1260 = vmatprep.subr.mxu0 %v348
  %1261 = vmatpush1.msra.mxu0 %v347
  %1262 = vmatprep.subr.mxu0 %v351
  %1263 = vmatpush1.msra.mxu0 %v350
  %1264 = vmatprep.subr.mxu0 %v354
  %1265 = vmatpush1.msra.mxu0 %v353
  %1266 = vmatprep.subr.mxu0 %v357
  %1267 = vmatpush1.msra.mxu0 %v356
  %1268 = vmatprep.subr.mxu0 %v360
  %1269 = vmatpush1.msra.mxu0 %v359
  %1270 = vmatprep.subr.mxu0 %v363
  %1271 = vmatpush1.msra.mxu0 %v362
  %1272 = vmatprep.subr.mxu0 %v366
  %1273 = vmatpush1.msra.mxu0 %v365
  %1274 = vmatprep.subr.mxu0 %v369
  %1275 = vmatpush1.msra.mxu0 %v368
  %1276 = vmatprep.subr.mxu0 %v372
  %1277 = vmatpush1.msra.mxu0 %v371
  %1278 = vmatprep.subr.mxu0 0.0
  %1279 = vmatpush1.msra.mxu0 0.0
  %1280 = vmatprep.subr.mxu0 0.0
  %1281 = vmatpush1.msra.mxu0 0.0
  %1282 = vmatprep.subr.mxu0 0.0
  %1283 = vmatpush1.msra.mxu0 0.0
  %1284 = vmatprep.subr.mxu0 0.0
  %1285 = vmatpush1.msra.mxu0 0.0
  %1286 = vmatprep.subr.mxu0 0.0
  %1287 = vmatpush1.msra.mxu0 0.0
  %1288 = vmatprep.subr.mxu0 0.0
  %1289 = vmatpush1.msra.mxu0 0.0
  %1290 = vmatprep.subr.mxu0 0.0
  %1291 = vmatpush1.msra.mxu0 0.0
  %1292 = vmatprep.subr.mxu0 0.0
  %1293 = vmatpush1.msra.mxu0 0.0
  %1294 = vmatprep.subr.mxu0 0.0
  %1295 = vmatpush1.msra.mxu0 0.0
  %1296 = vmatprep.subr.mxu0 0.0
  %1297 = vmatpush1.msra.mxu0 0.0
  %1298 = vmatprep.subr.mxu0 0.0
  %1299 = vmatpush1.msra.mxu0 0.0
  %1300 = vmatprep.subr.mxu0 0.0
  %1301 = vmatpush1.msra.mxu0 0.0
  %1302 = vmatprep.subr.mxu0 0.0
  %1303 = vmatpush1.msra.mxu0 0.0
  %1304 = vmatprep.subr.mxu0 0.0
  %1305 = vmatpush1.msra.mxu0 0.0
  %1306 = vmatprep.subr.mxu0 0.0
  %1307 = vmatpush1.msra.mxu0 0.0
  %1308 = vmatprep.subr.mxu0 0.0
  %1309 = vmatpush1.msra.mxu0 0.0
  %1310 = vmatprep.mubr.f32.mxu0 0.0
  %1311 = vmatmul.mubr.f32.gmra.mrb[0].mxu0 %v1237
  %v1312 = vpop.f32.mrb[0].mxu0
  %v1313 = vadd.f32 %v385, %v1312
  %v1314 = vpop.f32.mrb[0].mxu0
  %v1315 = vadd.f32 %v389, %v1314
  %1316 = vdwg.mxu0
  %1317 = vmatprep.subr.mxu0 0.0
  %1318 = vmatpush1.msra.mxu0 %v328
  %1319 = vmatprep.subr.mxu0 0.0
  %1320 = vmatpush1.msra.mxu0 %v331
  %1321 = vmatprep.subr.mxu0 0.0
  %1322 = vmatpush1.msra.mxu0 %v334
  %1323 = vmatprep.subr.mxu0 0.0
  %1324 = vmatpush1.msra.mxu0 %v337
  %1325 = vmatprep.subr.mxu0 0.0
  %1326 = vmatpush1.msra.mxu0 %v340
  %1327 = vmatprep.subr.mxu0 0.0
  %1328 = vmatpush1.msra.mxu0 %v343
  %1329 = vmatprep.subr.mxu0 0.0
  %1330 = vmatpush1.msra.mxu0 %v346
  %1331 = vmatprep.subr.mxu0 0.0
  %1332 = vmatpush1.msra.mxu0 %v349
  %1333 = vmatprep.subr.mxu0 0.0
  %1334 = vmatpush1.msra.mxu0 %v352
  %1335 = vmatprep.subr.mxu0 0.0
  %1336 = vmatpush1.msra.mxu0 %v355
  %1337 = vmatprep.subr.mxu0 0.0
  %1338 = vmatpush1.msra.mxu0 %v358
  %1339 = vmatprep.subr.mxu0 0.0
  %1340 = vmatpush1.msra.mxu0 %v361
  %1341 = vmatprep.subr.mxu0 0.0
  %1342 = vmatpush1.msra.mxu0 %v364
  %1343 = vmatprep.subr.mxu0 0.0
  %1344 = vmatpush1.msra.mxu0 %v367
  %1345 = vmatprep.subr.mxu0 0.0
  %1346 = vmatpush1.msra.mxu0 %v370
  %1347 = vmatprep.subr.mxu0 0.0
  %1348 = vmatpush1.msra.mxu0 %v373
  %1349 = vmatprep.subr.mxu0 0.0
  %1350 = vmatpush1.msra.mxu0 0.0
  %1351 = vmatprep.subr.mxu0 0.0
  %1352 = vmatpush1.msra.mxu0 0.0
  %1353 = vmatprep.subr.mxu0 0.0
  %1354 = vmatpush1.msra.mxu0 0.0
  %1355 = vmatprep.subr.mxu0 0.0
  %1356 = vmatpush1.msra.mxu0 0.0
  %1357 = vmatprep.subr.mxu0 0.0
  %1358 = vmatpush1.msra.mxu0 0.0
  %1359 = vmatprep.subr.mxu0 0.0
  %1360 = vmatpush1.msra.mxu0 0.0
  %1361 = vmatprep.subr.mxu0 0.0
  %1362 = vmatpush1.msra.mxu0 0.0
  %1363 = vmatprep.subr.mxu0 0.0
  %1364 = vmatpush1.msra.mxu0 0.0
  %1365 = vmatprep.subr.mxu0 0.0
  %1366 = vmatpush1.msra.mxu0 0.0
  %1367 = vmatprep.subr.mxu0 0.0
  %1368 = vmatpush1.msra.mxu0 0.0
  %1369 = vmatprep.subr.mxu0 0.0
  %1370 = vmatpush1.msra.mxu0 0.0
  %1371 = vmatprep.subr.mxu0 0.0
  %1372 = vmatpush1.msra.mxu0 0.0
  %1373 = vmatprep.subr.mxu0 0.0
  %1374 = vmatpush1.msra.mxu0 0.0
  %1375 = vmatprep.subr.mxu0 0.0
  %1376 = vmatpush1.msra.mxu0 0.0
  %1377 = vmatprep.subr.mxu0 0.0
  %1378 = vmatpush1.msra.mxu0 0.0
  %1379 = vmatprep.subr.mxu0 0.0
  %1380 = vmatpush1.msra.mxu0 0.0
  %1381 = vmatprep.mubr.f32.mxu0 0.0
  %1382 = vmatmul.mubr.f32.gmra.mrb[0].mxu0 %v1237
  %v1383 = vpop.f32.mrb[0].mxu0
  %v1384 = vadd.f32 %v393, %v1383
  %v1385 = vpop.f32.mrb[0].mxu0
  %1386 = vdwg.mxu0
  %v1387 = vadd.f32 %v1243, %v1313
  %v1388 = vxor.u32 %v1387, 2147483648
  %v1389 = vmul.f32 %v1388, 1.442695
  %v1390 = vpow.pop %v1389
  %v1391 = vadd.f32 %v1390, 1.0
  %v1392 = vrcp.pop %v1391
  %v1393 = vmul.f32 1.0, %v1392
  %v1394 = vadd.f32 %v1244, %v1315
  %v1395 = vxor.u32 %v1394, 2147483648
  %v1396 = vmul.f32 %v1395, 1.442695
  %v1397 = vpow.pop %v1396
  %v1398 = vadd.f32 %v1397, 1.0
  %v1399 = vrcp.pop %v1398
  %v1400 = vmul.f32 1.0, %v1399
  %v1401 = vmul.f32 %v1393, %v1384
  %v1402 = vadd.f32 %v1245, %v1401
  %v1403 = vtanh.pop %v1402
  %v1404 = vsub.f32 1.0, %v1400
  %v1405 = vmul.f32 %v1404, %v1403
  %v1406 = vmul.f32 %v1400, %v1237
  %v1407 = vadd.f32 %v1405, %v1406
  %s1408 = scalar_lea.vmem %s5, 40
  %1409 = vst [vmem:[%s1408] sm:$0xff] %v1407
  %s1410 = smul.u32 6, 3
  %s1411 = smul.addr %s1410, 8
  %s1412 = scalar_lea.vmem [#allocation2], %s1411
  %v1413 = vld [vmem:[%s1412] sm:$0xff]
  %v1414 = vld [vmem:[%s1412 + $0x8] sm:$0xff]
  %v1415 = vld [vmem:[%s1412 + $0x10] sm:$0xff]
  %1416 = vmatprep.subr.mxu0 %v327
  %1417 = vmatpush1.msra.mxu0 %v326
  %1418 = vmatprep.subr.mxu0 %v330
  %1419 = vmatpush1.msra.mxu0 %v329
  %1420 = vmatprep.subr.mxu0 %v333
  %1421 = vmatpush1.msra.mxu0 %v332
  %1422 = vmatprep.subr.mxu0 %v336
  %1423 = vmatpush1.msra.mxu0 %v335
  %1424 = vmatprep.subr.mxu0 %v339
  %1425 = vmatpush1.msra.mxu0 %v338
  %1426 = vmatprep.subr.mxu0 %v342
  %1427 = vmatpush1.msra.mxu0 %v341
  %1428 = vmatprep.subr.mxu0 %v345
  %1429 = vmatpush1.msra.mxu0 %v344
  %1430 = vmatprep.subr.mxu0 %v348
  %1431 = vmatpush1.msra.mxu0 %v347
  %1432 = vmatprep.subr.mxu0 %v351
  %1433 = vmatpush1.msra.mxu0 %v350
  %1434 = vmatprep.subr.mxu0 %v354
  %1435 = vmatpush1.msra.mxu0 %v353
  %1436 = vmatprep.subr.mxu0 %v357
  %1437 = vmatpush1.msra.mxu0 %v356
  %1438 = vmatprep.subr.mxu0 %v360
  %1439 = vmatpush1.msra.mxu0 %v359
  %1440 = vmatprep.subr.mxu0 %v363
  %1441 = vmatpush1.msra.mxu0 %v362
  %1442 = vmatprep.subr.mxu0 %v366
  %1443 = vmatpush1.msra.mxu0 %v365
  %1444 = vmatprep.subr.mxu0 %v369
  %1445 = vmatpush1.msra.mxu0 %v368
  %1446 = vmatprep.subr.mxu0 %v372
  %1447 = vmatpush1.msra.mxu0 %v371
  %1448 = vmatprep.subr.mxu0 0.0
  %1449 = vmatpush1.msra.mxu0 0.0
  %1450 = vmatprep.subr.mxu0 0.0
  %1451 = vmatpush1.msra.mxu0 0.0
  %1452 = vmatprep.subr.mxu0 0.0
  %1453 = vmatpush1.msra.mxu0 0.0
  %1454 = vmatprep.subr.mxu0 0.0
  %1455 = vmatpush1.msra.mxu0 0.0
  %1456 = vmatprep.subr.mxu0 0.0
  %1457 = vmatpush1.msra.mxu0 0.0
  %1458 = vmatprep.subr.mxu0 0.0
  %1459 = vmatpush1.msra.mxu0 0.0
  %1460 = vmatprep.subr.mxu0 0.0
  %1461 = vmatpush1.msra.mxu0 0.0
  %1462 = vmatprep.subr.mxu0 0.0
  %1463 = vmatpush1.msra.mxu0 0.0
  %1464 = vmatprep.subr.mxu0 0.0
  %1465 = vmatpush1.msra.mxu0 0.0
  %1466 = vmatprep.subr.mxu0 0.0
  %1467 = vmatpush1.msra.mxu0 0.0
  %1468 = vmatprep.subr.mxu0 0.0
  %1469 = vmatpush1.msra.mxu0 0.0
  %1470 = vmatprep.subr.mxu0 0.0
  %1471 = vmatpush1.msra.mxu0 0.0
  %1472 = vmatprep.subr.mxu0 0.0
  %1473 = vmatpush1.msra.mxu0 0.0
  %1474 = vmatprep.subr.mxu0 0.0
  %1475 = vmatpush1.msra.mxu0 0.0
  %1476 = vmatprep.subr.mxu0 0.0
  %1477 = vmatpush1.msra.mxu0 0.0
  %1478 = vmatprep.subr.mxu0 0.0
  %1479 = vmatpush1.msra.mxu0 0.0
  %1480 = vmatprep.mubr.f32.mxu0 0.0
  %1481 = vmatmul.mubr.f32.gmra.mrb[0].mxu0 %v1407
  %v1482 = vpop.f32.mrb[0].mxu0
  %v1483 = vadd.f32 %v385, %v1482
  %v1484 = vpop.f32.mrb[0].mxu0
  %v1485 = vadd.f32 %v389, %v1484
  %1486 = vdwg.mxu0
  %1487 = vmatprep.subr.mxu0 0.0
  %1488 = vmatpush1.msra.mxu0 %v328
  %1489 = vmatprep.subr.mxu0 0.0
  %1490 = vmatpush1.msra.mxu0 %v331
  %1491 = vmatprep.subr.mxu0 0.0
  %1492 = vmatpush1.msra.mxu0 %v334
  %1493 = vmatprep.subr.mxu0 0.0
  %1494 = vmatpush1.msra.mxu0 %v337
  %1495 = vmatprep.subr.mxu0 0.0
  %1496 = vmatpush1.msra.mxu0 %v340
  %1497 = vmatprep.subr.mxu0 0.0
  %1498 = vmatpush1.msra.mxu0 %v343
  %1499 = vmatprep.subr.mxu0 0.0
  %1500 = vmatpush1.msra.mxu0 %v346
  %1501 = vmatprep.subr.mxu0 0.0
  %1502 = vmatpush1.msra.mxu0 %v349
  %1503 = vmatprep.subr.mxu0 0.0
  %1504 = vmatpush1.msra.mxu0 %v352
  %1505 = vmatprep.subr.mxu0 0.0
  %1506 = vmatpush1.msra.mxu0 %v355
  %1507 = vmatprep.subr.mxu0 0.0
  %1508 = vmatpush1.msra.mxu0 %v358
  %1509 = vmatprep.subr.mxu0 0.0
  %1510 = vmatpush1.msra.mxu0 %v361
  %1511 = vmatprep.subr.mxu0 0.0
  %1512 = vmatpush1.msra.mxu0 %v364
  %1513 = vmatprep.subr.mxu0 0.0
  %1514 = vmatpush1.msra.mxu0 %v367
  %1515 = vmatprep.subr.mxu0 0.0
  %1516 = vmatpush1.msra.mxu0 %v370
  %1517 = vmatprep.subr.mxu0 0.0
  %1518 = vmatpush1.msra.mxu0 %v373
  %1519 = vmatprep.subr.mxu0 0.0
  %1520 = vmatpush1.msra.mxu0 0.0
  %1521 = vmatprep.subr.mxu0 0.0
  %1522 = vmatpush1.msra.mxu0 0.0
  %1523 = vmatprep.subr.mxu0 0.0
  %1524 = vmatpush1.msra.mxu0 0.0
  %1525 = vmatprep.subr.mxu0 0.0
  %1526 = vmatpush1.msra.mxu0 0.0
  %1527 = vmatprep.subr.mxu0 0.0
  %1528 = vmatpush1.msra.mxu0 0.0
  %1529 = vmatprep.subr.mxu0 0.0
  %1530 = vmatpush1.msra.mxu0 0.0
  %1531 = vmatprep.subr.mxu0 0.0
  %1532 = vmatpush1.msra.mxu0 0.0
  %1533 = vmatprep.subr.mxu0 0.0
  %1534 = vmatpush1.msra.mxu0 0.0
  %1535 = vmatprep.subr.mxu0 0.0
  %1536 = vmatpush1.msra.mxu0 0.0
  %1537 = vmatprep.subr.mxu0 0.0
  %1538 = vmatpush1.msra.mxu0 0.0
  %1539 = vmatprep.subr.mxu0 0.0
  %1540 = vmatpush1.msra.mxu0 0.0
  %1541 = vmatprep.subr.mxu0 0.0
  %1542 = vmatpush1.msra.mxu0 0.0
  %1543 = vmatprep.subr.mxu0 0.0
  %1544 = vmatpush1.msra.mxu0 0.0
  %1545 = vmatprep.subr.mxu0 0.0
  %1546 = vmatpush1.msra.mxu0 0.0
  %1547 = vmatprep.subr.mxu0 0.0
  %1548 = vmatpush1.msra.mxu0 0.0
  %1549 = vmatprep.subr.mxu0 0.0
  %1550 = vmatpush1.msra.mxu0 0.0
  %1551 = vmatprep.mubr.f32.mxu0 0.0
  %1552 = vmatmul.mubr.f32.gmra.mrb[0].mxu0 %v1407
  %v1553 = vpop.f32.mrb[0].mxu0
  %v1554 = vadd.f32 %v393, %v1553
  %v1555 = vpop.f32.mrb[0].mxu0
  %1556 = vdwg.mxu0
  %v1557 = vadd.f32 %v1413, %v1483
  %v1558 = vxor.u32 %v1557, 2147483648
  %v1559 = vmul.f32 %v1558, 1.442695
  %v1560 = vpow.pop %v1559
  %v1561 = vadd.f32 %v1560, 1.0
  %v1562 = vrcp.pop %v1561
  %v1563 = vmul.f32 1.0, %v1562
  %v1564 = vadd.f32 %v1414, %v1485
  %v1565 = vxor.u32 %v1564, 2147483648
  %v1566 = vmul.f32 %v1565, 1.442695
  %v1567 = vpow.pop %v1566
  %v1568 = vadd.f32 %v1567, 1.0
  %v1569 = vrcp.pop %v1568
  %v1570 = vmul.f32 1.0, %v1569
  %v1571 = vmul.f32 %v1563, %v1554
  %v1572 = vadd.f32 %v1415, %v1571
  %v1573 = vtanh.pop %v1572
  %v1574 = vsub.f32 1.0, %v1570
  %v1575 = vmul.f32 %v1574, %v1573
  %v1576 = vmul.f32 %v1570, %v1407
  %v1577 = vadd.f32 %v1575, %v1576
  %s1578 = scalar_lea.vmem %s5, 48
  %1579 = vst [vmem:[%s1578] sm:$0xff] %v1577
  %s1580 = smul.u32 7, 3
  %s1581 = smul.addr %s1580, 8
  %s1582 = scalar_lea.vmem [#allocation2], %s1581
  %v1583 = vld [vmem:[%s1582] sm:$0xff]
  %v1584 = vld [vmem:[%s1582 + $0x8] sm:$0xff]
  %v1585 = vld [vmem:[%s1582 + $0x10] sm:$0xff]
  %1586 = vmatprep.subr.mxu0 %v327
  %1587 = vmatpush1.msra.mxu0 %v326
  %1588 = vmatprep.subr.mxu0 %v330
  %1589 = vmatpush1.msra.mxu0 %v329
  %1590 = vmatprep.subr.mxu0 %v333
  %1591 = vmatpush1.msra.mxu0 %v332
  %1592 = vmatprep.subr.mxu0 %v336
  %1593 = vmatpush1.msra.mxu0 %v335
  %1594 = vmatprep.subr.mxu0 %v339
  %1595 = vmatpush1.msra.mxu0 %v338
  %1596 = vmatprep.subr.mxu0 %v342
  %1597 = vmatpush1.msra.mxu0 %v341
  %1598 = vmatprep.subr.mxu0 %v345
  %1599 = vmatpush1.msra.mxu0 %v344
  %1600 = vmatprep.subr.mxu0 %v348
  %1601 = vmatpush1.msra.mxu0 %v347
  %1602 = vmatprep.subr.mxu0 %v351
  %1603 = vmatpush1.msra.mxu0 %v350
  %1604 = vmatprep.subr.mxu0 %v354
  %1605 = vmatpush1.msra.mxu0 %v353
  %1606 = vmatprep.subr.mxu0 %v357
  %1607 = vmatpush1.msra.mxu0 %v356
  %1608 = vmatprep.subr.mxu0 %v360
  %1609 = vmatpush1.msra.mxu0 %v359
  %1610 = vmatprep.subr.mxu0 %v363
  %1611 = vmatpush1.msra.mxu0 %v362
  %1612 = vmatprep.subr.mxu0 %v366
  %1613 = vmatpush1.msra.mxu0 %v365
  %1614 = vmatprep.subr.mxu0 %v369
  %1615 = vmatpush1.msra.mxu0 %v368
  %1616 = vmatprep.subr.mxu0 %v372
  %1617 = vmatpush1.msra.mxu0 %v371
  %1618 = vmatprep.subr.mxu0 0.0
  %1619 = vmatpush1.msra.mxu0 0.0
  %1620 = vmatprep.subr.mxu0 0.0
  %1621 = vmatpush1.msra.mxu0 0.0
  %1622 = vmatprep.subr.mxu0 0.0
  %1623 = vmatpush1.msra.mxu0 0.0
  %1624 = vmatprep.subr.mxu0 0.0
  %1625 = vmatpush1.msra.mxu0 0.0
  %1626 = vmatprep.subr.mxu0 0.0
  %1627 = vmatpush1.msra.mxu0 0.0
  %1628 = vmatprep.subr.mxu0 0.0
  %1629 = vmatpush1.msra.mxu0 0.0
  %1630 = vmatprep.subr.mxu0 0.0
  %1631 = vmatpush1.msra.mxu0 0.0
  %1632 = vmatprep.subr.mxu0 0.0
  %1633 = vmatpush1.msra.mxu0 0.0
  %1634 = vmatprep.subr.mxu0 0.0
  %1635 = vmatpush1.msra.mxu0 0.0
  %1636 = vmatprep.subr.mxu0 0.0
  %1637 = vmatpush1.msra.mxu0 0.0
  %1638 = vmatprep.subr.mxu0 0.0
  %1639 = vmatpush1.msra.mxu0 0.0
  %1640 = vmatprep.subr.mxu0 0.0
  %1641 = vmatpush1.msra.mxu0 0.0
  %1642 = vmatprep.subr.mxu0 0.0
  %1643 = vmatpush1.msra.mxu0 0.0
  %1644 = vmatprep.subr.mxu0 0.0
  %1645 = vmatpush1.msra.mxu0 0.0
  %1646 = vmatprep.subr.mxu0 0.0
  %1647 = vmatpush1.msra.mxu0 0.0
  %1648 = vmatprep.subr.mxu0 0.0
  %1649 = vmatpush1.msra.mxu0 0.0
  %1650 = vmatprep.mubr.f32.mxu0 0.0
  %1651 = vmatmul.mubr.f32.gmra.mrb[0].mxu0 %v1577
  %v1652 = vpop.f32.mrb[0].mxu0
  %v1653 = vadd.f32 %v385, %v1652
  %v1654 = vpop.f32.mrb[0].mxu0
  %v1655 = vadd.f32 %v389, %v1654
  %1656 = vdwg.mxu0
  %1657 = vmatprep.subr.mxu0 0.0
  %1658 = vmatpush1.msra.mxu0 %v328
  %1659 = vmatprep.subr.mxu0 0.0
  %1660 = vmatpush1.msra.mxu0 %v331
  %1661 = vmatprep.subr.mxu0 0.0
  %1662 = vmatpush1.msra.mxu0 %v334
  %1663 = vmatprep.subr.mxu0 0.0
  %1664 = vmatpush1.msra.mxu0 %v337
  %1665 = vmatprep.subr.mxu0 0.0
  %1666 = vmatpush1.msra.mxu0 %v340
  %1667 = vmatprep.subr.mxu0 0.0
  %1668 = vmatpush1.msra.mxu0 %v343
  %1669 = vmatprep.subr.mxu0 0.0
  %1670 = vmatpush1.msra.mxu0 %v346
  %1671 = vmatprep.subr.mxu0 0.0
  %1672 = vmatpush1.msra.mxu0 %v349
  %1673 = vmatprep.subr.mxu0 0.0
  %1674 = vmatpush1.msra.mxu0 %v352
  %1675 = vmatprep.subr.mxu0 0.0
  %1676 = vmatpush1.msra.mxu0 %v355
  %1677 = vmatprep.subr.mxu0 0.0
  %1678 = vmatpush1.msra.mxu0 %v358
  %1679 = vmatprep.subr.mxu0 0.0
  %1680 = vmatpush1.msra.mxu0 %v361
  %1681 = vmatprep.subr.mxu0 0.0
  %1682 = vmatpush1.msra.mxu0 %v364
  %1683 = vmatprep.subr.mxu0 0.0
  %1684 = vmatpush1.msra.mxu0 %v367
  %1685 = vmatprep.subr.mxu0 0.0
  %1686 = vmatpush1.msra.mxu0 %v370
  %1687 = vmatprep.subr.mxu0 0.0
  %1688 = vmatpush1.msra.mxu0 %v373
  %1689 = vmatprep.subr.mxu0 0.0
  %1690 = vmatpush1.msra.mxu0 0.0
  %1691 = vmatprep.subr.mxu0 0.0
  %1692 = vmatpush1.msra.mxu0 0.0
  %1693 = vmatprep.subr.mxu0 0.0
  %1694 = vmatpush1.msra.mxu0 0.0
  %1695 = vmatprep.subr.mxu0 0.0
  %1696 = vmatpush1.msra.mxu0 0.0
  %1697 = vmatprep.subr.mxu0 0.0
  %1698 = vmatpush1.msra.mxu0 0.0
  %1699 = vmatprep.subr.mxu0 0.0
  %1700 = vmatpush1.msra.mxu0 0.0
  %1701 = vmatprep.subr.mxu0 0.0
  %1702 = vmatpush1.msra.mxu0 0.0
  %1703 = vmatprep.subr.mxu0 0.0
  %1704 = vmatpush1.msra.mxu0 0.0
  %1705 = vmatprep.subr.mxu0 0.0
  %1706 = vmatpush1.msra.mxu0 0.0
  %1707 = vmatprep.subr.mxu0 0.0
  %1708 = vmatpush1.msra.mxu0 0.0
  %1709 = vmatprep.subr.mxu0 0.0
  %1710 = vmatpush1.msra.mxu0 0.0
  %1711 = vmatprep.subr.mxu0 0.0
  %1712 = vmatpush1.msra.mxu0 0.0
  %1713 = vmatprep.subr.mxu0 0.0
  %1714 = vmatpush1.msra.mxu0 0.0
  %1715 = vmatprep.subr.mxu0 0.0
  %1716 = vmatpush1.msra.mxu0 0.0
  %1717 = vmatprep.subr.mxu0 0.0
  %1718 = vmatpush1.msra.mxu0 0.0
  %1719 = vmatprep.subr.mxu0 0.0
  %1720 = vmatpush1.msra.mxu0 0.0
  %1721 = vmatprep.mubr.f32.mxu0 0.0
  %1722 = vmatmul.mubr.f32.gmra.mrb[0].mxu0 %v1577
  %v1723 = vpop.f32.mrb[0].mxu0
  %v1724 = vadd.f32 %v393, %v1723
  %v1725 = vpop.f32.mrb[0].mxu0
  %1726 = vdwg.mxu0
  %v1727 = vadd.f32 %v1583, %v1653
  %v1728 = vxor.u32 %v1727, 2147483648
  %v1729 = vmul.f32 %v1728, 1.442695
  %v1730 = vpow.pop %v1729
  %v1731 = vadd.f32 %v1730, 1.0
  %v1732 = vrcp.pop %v1731
  %v1733 = vmul.f32 1.0, %v1732
  %v1734 = vadd.f32 %v1584, %v1655
  %v1735 = vxor.u32 %v1734, 2147483648
  %v1736 = vmul.f32 %v1735, 1.442695
  %v1737 = vpow.pop %v1736
  %v1738 = vadd.f32 %v1737, 1.0
  %v1739 = vrcp.pop %v1738
  %v1740 = vmul.f32 1.0, %v1739
  %v1741 = vmul.f32 %v1733, %v1724
  %v1742 = vadd.f32 %v1585, %v1741
  %v1743 = vtanh.pop %v1742
  %v1744 = vsub.f32 1.0, %v1740
  %v1745 = vmul.f32 %v1744, %v1743
  %v1746 = vmul.f32 %v1740, %v1577
  %v1747 = vadd.f32 %v1745, %v1746
  %s1748 = scalar_lea.vmem %s5, 56
  %1749 = vst [vmem:[%s1748] sm:$0xff] %v1747
  %1750 = vst [vmem:[%s6] sm:$0xff] %v1747
  // Predicated region
  $region22: #{gru_encoder.1} parent=0 // pred_check
    _
  $region23: #{gru_encoder.1} parent=0 // pred_check_branch
    %1752 = sbr.rel (0) target = $region25
  $region24: #{gru_encoder.1} parent=0 // pred_region
    _
  $region25: #{gru_encoder.1} parent=0 // pred_fallthru
    _
  // Predicated region
  $region26: #{gru_encoder.1} parent=0 // pred_check
    _
  $region27: #{gru_encoder.1} parent=0 // pred_check_branch
    %1754 = sbr.rel (0) target = $region29
  $region28: #{gru_encoder.1} parent=0 // pred_region
    _
  $region29: #{gru_encoder.1} parent=0 // pred_fallthru
    _
  // Predicated region
  $region30: #{gru_encoder.1} parent=0 // pred_check
    _
  $region31: #{gru_encoder.1} parent=0 // pred_check_branch
    %1756 = sbr.rel (0) target = $region33
  $region32: #{gru_encoder.1} parent=0 // pred_region
    _
  $region33: #{gru_encoder.1} parent=0 // pred_fallthru
    _
  // Predicated region
  $region34: #{gru_encoder.1} parent=0 // pred_check
    _
  $region35: #{gru_encoder.1} parent=0 // pred_check_branch
    %1758 = sbr.rel (0) target = $region37
  $region36: #{gru_encoder.1} parent=0 // pred_region
    _
  $region37: #{gru_encoder.1} parent=0 // pred_fallthru
    _

</llo_original>
